<compile_context>
chip_gen: v5e
topology: v5e:2x2
jax: 0.10.0
libtpu: 0.0.40
codegen_flags: <defaults>
</compile_context>

<pallas_src>
import functools

import numpy as np

import jax
import jax.numpy as jnp
from jax import lax
from jax.experimental import pallas as pl
from jax.experimental.pallas import tpu as pltpu


# ----------------------------------------------------------------------------
# Fused kernel: z_proj + LeakyReLU + all Upsample blocks (ConvT + BN + Leaky)
# ----------------------------------------------------------------------------
def _make_fused_kernel(B, C0, P, block_channels, eps=1e-5):
    """Build the fused pre-conv kernel for a fixed (static) configuration.

    Ref layout (in order): z (B, latent), wz (latent, P*C0), bz (1, P*C0),
    then per block: w4 (Cin, 4*Cout), bn ((3, Cout) or (3, 4*Cout) for the last
    block), then the output (M_last, 4*C_last) and per-stage VMEM scratch.
    """
    nb = len(block_channels)

    def kernel(*refs):
        z_ref, wz_ref, bz_ref = refs[:3]
        blk_refs = refs[3:3 + 2 * nb]
        o_ref = refs[3 + 2 * nb]
        scratch = refs[3 + 2 * nb + 1:]

        # --- z_proj Linear + LeakyReLU(0.01); weight columns are pixel-major ---
        h = jnp.dot(z_ref[...], wz_ref[...], preferred_element_type=jnp.float32)
        h = h + bz_ref[...]
        h = jnp.maximum(h, 0.01 * h)

        # Scatter (B, P*C0) -> pixel-major rows (P*B, C0) via static slice stores.
        x0 = scratch[0]
        for p in range(P):
            x0[p * B:(p + 1) * B, :] = h[:, p * C0:(p + 1) * C0]
        cur = x0[...]
        rows = P * B

        for i, cout in enumerate(block_channels):
            w_ref, bn_ref = blk_refs[2 * i], blk_refs[2 * i + 1]
            # ConvTranspose2d(k=2, s=2): the 4 taps fused into output columns
            # of a single matmul (columns ordered (a, b, cout)).
            y = jnp.dot(cur, w_ref[...], preferred_element_type=jnp.float32)

            if i + 1 < nb:
                # Fold taps into rows (deferred spatial interleave): BatchNorm
                # becomes a plain per-column reduction and the next block sees
                # pixel rows directly — no fold matmul, no extra HBM traffic.
                nxt = scratch[i + 1]
                for t in range(4):
                    nxt[t * rows:(t + 1) * rows, :] = y[:, t * cout:(t + 1) * cout]
                rows *= 4
                bn = bn_ref[...]                       # (3, cout): bias, gamma, beta
                v = nxt[...] + bn[0:1, :]
                inv = 1.0 / rows
                mean = jnp.sum(v, axis=0, keepdims=True) * inv
                d = v - mean
                var = jnp.sum(d * d, axis=0, keepdims=True) * inv
                v = d * lax.rsqrt(var + eps) * bn[1:2, :] + bn[2:3, :]
                cur = jnp.maximum(v, 0.2 * v)
            else:
                # Last block: keep taps in columns (single widest store); fold the
                # BN stats over the 4 tap groups with static lane slices (VPU/XLU
                # only — no MXU fold matmul, no fold operand).
                bn = bn_ref[...]                       # (3, 4*cout), tap-tiled
                y = y + bn[0:1, :]
                inv = 1.0 / (rows * 4)
                cs = jnp.sum(y, axis=0, keepdims=True)
                tot = (cs[:, 0:cout] + cs[:, cout:2 * cout]
                       + cs[:, 2 * cout:3 * cout] + cs[:, 3 * cout:4 * cout])
                mean = jnp.concatenate([tot, tot, tot, tot], axis=1) * inv
                d = y - mean
                ss = jnp.sum(d * d, axis=0, keepdims=True)
                tt = (ss[:, 0:cout] + ss[:, cout:2 * cout]
                      + ss[:, 2 * cout:3 * cout] + ss[:, 3 * cout:4 * cout])
                var = jnp.concatenate([tt, tt, tt, tt], axis=1) * inv
                v = d * lax.rsqrt(var + eps) * bn[1:2, :] + bn[2:3, :]
                v = jnp.maximum(v, 0.2 * v)
                # bf16 inter-kernel activation (feeds the bf16 conv matmul).
                o_ref[...] = v.astype(o_ref.dtype)

    return kernel


def _fused_stack(z, prep, cfg):
    """One pallas_call: z_proj + every upsample block, intermediates in VMEM."""
    B = z.shape[0]
    C0, H0, W0 = cfg["C0"], cfg["H0"], cfg["W0"]
    P = H0 * W0
    ch = cfg["block_channels"]
    nb = len(ch)
    m_last = B * P * (4 ** (nb - 1))
    c_last = ch[-1]

    kern = _make_fused_kernel(B, C0, P, ch)

    in_specs = [pl.BlockSpec(z.shape, lambda i: (0, 0)),
                pl.BlockSpec(prep["wz"].shape, lambda i: (0, 0)),
                pl.BlockSpec(prep["bz"].shape, lambda i: (0, 0))]
    operands = [z, prep["wz"], prep["bz"]]
    for w4, bn in zip(prep["blk_w"], prep["blk_bn"]):
        in_specs.append(pl.BlockSpec(w4.shape, lambda i: (0, 0)))
        in_specs.append(pl.BlockSpec(bn.shape, lambda i: (0, 0)))
        operands += [w4, bn]

    scratch = [pltpu.VMEM((B * P, C0), jnp.float32)]
    rows = B * P
    for i in range(nb - 1):
        rows *= 4
        scratch.append(pltpu.VMEM((rows, ch[i]), jnp.float32))

    return pl.pallas_call(
        kern,
        out_shape=jax.ShapeDtypeStruct((m_last, 4 * c_last), jnp.bfloat16),
        grid=(1,),
        in_specs=in_specs,
        out_specs=pl.BlockSpec((m_last, 4 * c_last), lambda i: (0, 0)),
        scratch_shapes=scratch,
        compiler_params=pltpu.CompilerParams(dimension_semantics=("arbitrary",)),
    )(*operands)


# ----------------------------------------------------------------------------
# Final Conv2d(k=3, padding=1): banded matmuls, lane-dense output, grid=(N,)
# ----------------------------------------------------------------------------
def _conv3x3_kernel(x_ref, w_ref, b_ref, o_ref):
    """x_ref: (1, 3, H, Kd) pre-shifted bf16 row planes (tile-aligned slices),
    w_ref: (3, Kd, W*Cp) bf16 block-banded weights, b_ref: (1, W*Cp) f32,
    o_ref: (1, H, W*Cp) f32 — output columns are a full 128-lane slab."""
    acc = b_ref[...]
    for dh in range(3):
        acc = acc + jnp.dot(x_ref[0, dh], w_ref[dh],
                            preferred_element_type=jnp.float32)
    o_ref[0] = acc


def _conv3x3(planes, prep, cfg):
    B = planes.shape[0]
    Himg, Wimg, Cp, Kd = cfg["Himg"], cfg["Wimg"], cfg["Cp"], cfg["Kd"]
    WCp = Wimg * Cp
    return pl.pallas_call(
        _conv3x3_kernel,
        out_shape=jax.ShapeDtypeStruct((B, Himg, WCp), jnp.float32),
        grid=(B,),
        in_specs=[
            pl.BlockSpec((1, 3, Himg, Kd), lambda n: (n, 0, 0, 0)),
            pl.BlockSpec((3, Kd, WCp), lambda n: (0, 0, 0)),
            pl.BlockSpec((1, WCp), lambda n: (0, 0)),
        ],
        out_specs=pl.BlockSpec((1, Himg, WCp), lambda n: (n, 0, 0)),
        compiler_params=pltpu.CompilerParams(dimension_semantics=("parallel",)),
    )(planes, prep["wband"], prep["bband"])


# ----------------------------------------------------------------------------
# Wrapper glue (layout only; runs once per forward on <50 KB tensors)
# ----------------------------------------------------------------------------
def _deinterleave(y, B, H0, W0, nb, c_last):
    """Single composed permutation: fused-kernel row/col layout -> NHWC image."""
    # rows: (a_{nb-1}, b_{nb-1}, ..., a_1, b_1, h0, w0, batch); cols: (a_nb, b_nb, c)
    dims = (2, 2) * (nb - 1) + (H0, W0, B) + (2, 2, c_last)
    t = y.reshape(dims)
    base = 2 * (nb - 1)
    ax_a = {i: 2 * (nb - 1 - i) for i in range(1, nb)}
    ax_b = {i: 2 * (nb - 1 - i) + 1 for i in range(1, nb)}
    ax_h0, ax_w0, ax_batch = base, base + 1, base + 2
    ax_a[nb], ax_b[nb] = base + 3, base + 4
    ax_c = base + 5
    perm = ([ax_batch, ax_h0] + [ax_a[i] for i in range(1, nb + 1)]
            + [ax_w0] + [ax_b[i] for i in range(1, nb + 1)] + [ax_c])
    t = jnp.transpose(t, perm)
    return t.reshape(B, H0 * (2 ** nb), W0 * (2 ** nb), c_last)


def _make_conv_planes(img, cfg):
    """Pad spatially, flatten (W, C), lane-pad K to 128, and emit the three
    dh-shifted row planes so the conv kernel only does tile-aligned loads."""
    B, H, W, C = img.shape
    Kd = cfg["Kd"]
    xp = jnp.pad(img, ((0, 0), (1, 1), (1, 1), (0, 0)))
    xp = xp.reshape(B, H + 2, (W + 2) * C)
    xp = jnp.pad(xp, ((0, 0), (0, 0), (0, Kd - (W + 2) * C)))
    return jnp.stack([xp[:, 0:H], xp[:, 1:H + 1], xp[:, 2:H + 2]], axis=1)


def decoder_forward(z, prep, cfg):
    B = z.shape[0]
    nb = len(cfg["block_channels"])
    # 1) fused z_proj + all upsample blocks (one kernel, VMEM-resident).
    y = _fused_stack(z, prep, cfg)
    # 2) the only inter-kernel layout op: one composed deinterleave permutation.
    img = _deinterleave(y, B, cfg["H0"], cfg["W0"], nb, cfg["block_channels"][-1])
    # 3) pad + pre-shifted planes, then the banded 3x3 conv kernel.
    planes = _make_conv_planes(img, cfg)
    out = _conv3x3(planes, prep, cfg)
    out = out.reshape(B, cfg["Himg"], cfg["Wimg"], cfg["Cp"])[..., :cfg["Cout"]]
    # back to PyTorch NCHW
    return jnp.transpose(out, (0, 3, 1, 2))


# ----------------------------------------------------------------------------
# Parameters: init (PyTorch layouts) + one-off kernel-ready preparation
# ----------------------------------------------------------------------------
def init_decoder_params(key, out_channels, hidden_channels, latent_dim,
                        latent_input_dim):
    hc = hidden_channels[::-1]
    prod_lid = int(latent_input_dim[0] * latent_input_dim[1] * latent_input_dim[2])
    keys = iter(jax.random.split(key, 32))
    params = {
        "z_proj_w": 0.1 * jax.random.normal(next(keys), (latent_dim, prod_lid), jnp.float32),
        "z_proj_b": 0.1 * jax.random.normal(next(keys), (prod_lid,), jnp.float32),
        "blocks": [],
        "out_w": 0.1 * jax.random.normal(next(keys), (out_channels, hc[-1], 3, 3), jnp.float32),
        "out_b": 0.1 * jax.random.normal(next(keys), (out_channels,), jnp.float32),
    }
    for i in range(len(hc) - 1):
        cin, cout = hc[i], hc[i + 1]
        params["blocks"].append({
            "w": 0.1 * jax.random.normal(next(keys), (cin, cout, 2, 2), jnp.float32),
            "b": 0.1 * jax.random.normal(next(keys), (cout,), jnp.float32),
            "gamma": jnp.ones((cout,), jnp.float32),   # torch BatchNorm2d default init
            "beta": jnp.zeros((cout,), jnp.float32),
        })
    return params


def prepare_params(params, latent_input_dim):
    """One-off (outside jit): build all kernel-ready weights so no weight
    reshaping / banding / tiling runs inside the jitted forward."""
    C0, H0, W0 = latent_input_dim
    P = H0 * W0
    ld = params["z_proj_w"].shape[0]
    nb = len(params["blocks"])

    # z_proj: permute output columns to pixel-major (h0, w0, c0); this folds the
    # torch view(-1, C0, H0, W0) + NCHW->NHWC transpose into the weight.
    wz = jnp.asarray(params["z_proj_w"], jnp.float32)
    wz = wz.reshape(ld, C0, P).transpose(0, 2, 1).reshape(ld, P * C0)
    bz = jnp.asarray(params["z_proj_b"], jnp.float32)
    bz = bz.reshape(C0, P).T.reshape(1, P * C0)

    blk_w, blk_bn, block_channels = [], [], []
    for i, blk in enumerate(params["blocks"]):
        w = jnp.asarray(blk["w"], jnp.float32)           # (Cin, Cout, 2, 2)
        cout = int(w.shape[1])
        block_channels.append(cout)
        blk_w.append(jnp.transpose(w, (0, 2, 3, 1)).reshape(w.shape[0], 4 * cout))
        if i + 1 < nb:                                   # BN applied per-column after tap fold
            bn = jnp.stack([blk["b"], blk["gamma"], blk["beta"]], axis=0)
        else:                                            # last block keeps taps in columns
            bn = jnp.stack([jnp.tile(blk["b"], 4), jnp.tile(blk["gamma"], 4),
                            jnp.tile(blk["beta"], 4)], axis=0)
        blk_bn.append(bn.astype(jnp.float32))

    # Final 3x3 conv: block-banded weights acting on width-flattened padded rows,
    # contraction dim padded to 128, Cout padded so W*Cp is 128 (lane-dense output).
    K = np.asarray(params["out_w"], np.float32)          # (Cout, Cin, 3, 3)
    Cout, Cin = K.shape[0], K.shape[1]
    Himg, Wimg = H0 * (2 ** nb), W0 * (2 ** nb)
    Cp = max(Cout, -(-128 // Wimg))                      # here: W*Cp == 128 exactly
    WCp = Wimg * Cp
    Kd = -(-((Wimg + 2) * Cin) // 128) * 128
    band = np.zeros((3, Kd, WCp), np.float32)
    for dh in range(3):
        for dw in range(3):
            for j in range(Wimg):
                band[dh, (j + dw) * Cin:(j + dw) * Cin + Cin,
                     j * Cp:j * Cp + Cout] = K[:, :, dh, dw].T
    bband = np.zeros((1, WCp), np.float32)
    for j in range(Wimg):
        bband[0, j * Cp:j * Cp + Cout] = np.asarray(params["out_b"], np.float32)

    prep = {"wz": wz, "bz": bz, "blk_w": blk_w, "blk_bn": blk_bn,
            "wband": jnp.asarray(band, jnp.bfloat16),     # bf16 weights: halve DMA bytes
            "bband": jnp.asarray(bband, jnp.float32)}
    cfg = {"C0": C0, "H0": H0, "W0": W0, "block_channels": tuple(block_channels),
           "Cout": Cout, "Cp": Cp, "Himg": Himg, "Wimg": Wimg, "Kd": Kd}
    return prep, cfg


# ----------------------------------------------------------------------------
# Pure-JAX reference (f32) for validation
# ----------------------------------------------------------------------------
def reference_forward(z, params, latent_input_dim):
    C0, H0, W0 = latent_input_dim
    B = z.shape[0]
    y = z @ params["z_proj_w"] + params["z_proj_b"]
    y = jnp.where(y >= 0, y, 0.01 * y)
    x = y.reshape(B, C0, H0, W0)
    for blk in params["blocks"]:
        w, b = blk["w"], blk["b"]
        N_, Cin, H, W = x.shape
        Cout = w.shape[1]
        t = jnp.einsum("nchw,cdab->ndhawb", x, w).reshape(N_, Cout, 2 * H, 2 * W)
        t = t + b[None, :, None, None]
        mean = t.mean(axis=(0, 2, 3), keepdims=True)
        var = ((t - mean) ** 2).mean(axis=(0, 2, 3), keepdims=True)
        t = (t - mean) / jnp.sqrt(var + 1e-5)
        t = t * blk["gamma"][None, :, None, None] + blk["beta"][None, :, None, None]
        x = jnp.where(t >= 0, t, 0.2 * t)
    out = lax.conv_general_dilated(
        x, params["out_w"], window_strides=(1, 1), padding=((1, 1), (1, 1)),
        dimension_numbers=("NCHW", "OIHW", "NCHW"))
    return out + params["out_b"][None, :, None, None]


# ----------------------------------------------------------------------------
if __name__ == "__main__":
    # Small configuration consistent with the module:
    #   hidden_channels=[4, 8, 16] -> reversed [16, 8, 4]
    #   latent_input_dim=(16, 4, 4), latent_dim=8, out_channels=3, batch=2
    out_channels = 3
    hidden_channels = [4, 8, 16]
    latent_dim = 8
    latent_input_dim = (16, 4, 4)
    batch = 2

    key = jax.random.PRNGKey(0)
    k_params, k_z = jax.random.split(key)
    params = init_decoder_params(
        k_params, out_channels, hidden_channels, latent_dim, latent_input_dim
    )
    z = jax.random.normal(k_z, (batch, latent_dim), jnp.float32)

    # One-off, outside jit: all weight permutation / tap fusion / banding.
    prep, cfg = prepare_params(params, latent_input_dim)

    fwd = jax.jit(functools.partial(decoder_forward, cfg=cfg))
    y = jax.block_until_ready(fwd(z, prep))

    expected = (batch, out_channels, latent_input_dim[1] * 4, latent_input_dim[2] * 4)
    assert y.shape == expected, (y.shape, expected)
    assert y.dtype == jnp.float32
    assert bool(jnp.all(jnp.isfinite(y)))

    ref = reference_forward(z, params, latent_input_dim)
    err = float(jnp.max(jnp.abs(y - ref)))
    # Everything up to the final conv is f32; only the 3x3 conv uses bf16
    # activations/weights with f32 accumulation -> tight tolerance.
    assert err < 0.05, f"max abs diff vs reference: {err}"

    print("KERNEL_OK")
</pallas_src>

<mosaic_0001>
module attributes {stable_mosaic.version = 11 : i64} {
  func.func @kernel(%arg0: i32, %arg1: memref<2x8xf32, #tpu.memory_space<vmem>>, %arg2: memref<8x256xf32, #tpu.memory_space<vmem>>, %arg3: memref<1x256xf32, #tpu.memory_space<vmem>>, %arg4: memref<16x32xf32, #tpu.memory_space<vmem>>, %arg5: memref<3x8xf32, #tpu.memory_space<vmem>>, %arg6: memref<8x16xf32, #tpu.memory_space<vmem>>, %arg7: memref<3x16xf32, #tpu.memory_space<vmem>>, %arg8: memref<128x16xbf16, #tpu.memory_space<vmem>>, %arg9: memref<32x16xf32, #tpu.memory_space<vmem>>, %arg10: memref<128x8xf32, #tpu.memory_space<vmem>>) attributes {dimension_semantics = [#tpu.dimension_semantics<arbitrary>], iteration_bounds = array<i64: 1>, scalar_prefetch = 0 : i64, scratch_operands = 2 : i64, tpu.core_type = #tpu.core_type<tc>, window_params = [{pipeline_mode = #tpu.pipeline_mode<synchronous>, transform_indices = @transform_0, window_bounds = array<i64: 2, 8>}, {pipeline_mode = #tpu.pipeline_mode<synchronous>, transform_indices = @transform_1, window_bounds = array<i64: 8, 256>}, {pipeline_mode = #tpu.pipeline_mode<synchronous>, transform_indices = @transform_2, window_bounds = array<i64: 1, 256>}, {pipeline_mode = #tpu.pipeline_mode<synchronous>, transform_indices = @transform_3, window_bounds = array<i64: 16, 32>}, {pipeline_mode = #tpu.pipeline_mode<synchronous>, transform_indices = @transform_4, window_bounds = array<i64: 3, 8>}, {pipeline_mode = #tpu.pipeline_mode<synchronous>, transform_indices = @transform_5, window_bounds = array<i64: 8, 16>}, {pipeline_mode = #tpu.pipeline_mode<synchronous>, transform_indices = @transform_6, window_bounds = array<i64: 3, 16>}, {pipeline_mode = #tpu.pipeline_mode<synchronous>, transform_indices = @transform_7, window_bounds = array<i64: 128, 16>}]} {
    %c0 = arith.constant 0 : index
    %c0_0 = arith.constant 0 : index
    %0 = vector.load %arg1[%c0, %c0_0] : memref<2x8xf32, #tpu.memory_space<vmem>>, vector<2x8xf32>
    %c0_1 = arith.constant 0 : index
    %c0_2 = arith.constant 0 : index
    %1 = vector.load %arg2[%c0_1, %c0_2] : memref<8x256xf32, #tpu.memory_space<vmem>>, vector<8x256xf32>
    %cst = arith.constant dense<0.000000e+00> : vector<2x256xf32>
    %2 = tpu.matmul %0, %1, %cst {dimension_numbers = #tpu.dot_dimension_numbers<[1], [0], [0], [1], [0, 0, 1, 1], [], []>} : vector<2x8xf32>, vector<8x256xf32>, vector<2x256xf32> -> vector<2x256xf32>
    %c0_3 = arith.constant 0 : index
    %c0_4 = arith.constant 0 : index
    %3 = vector.load %arg3[%c0_3, %c0_4] : memref<1x256xf32, #tpu.memory_space<vmem>>, vector<1x256xf32>
    %4 = vector.broadcast %3 : vector<1x256xf32> to vector<2x256xf32>
    %5 = arith.addf %2, %4 : vector<2x256xf32>
    %cst_5 = arith.constant 0.00999999977 : f32
    %6 = vector.broadcast %cst_5 : f32 to vector<2x256xf32>
    %7 = arith.mulf %6, %5 : vector<2x256xf32>
    %8 = arith.maximumf %5, %7 : vector<2x256xf32>
    %9 = vector.extract_strided_slice %8 {offsets = [0, 0], sizes = [2, 16], strides = [1, 1]} : vector<2x256xf32> to vector<2x16xf32>
    %c0_6 = arith.constant 0 : index
    %c0_7 = arith.constant 0 : index
    %10 = vector.load %arg9[%c0_6, %c0_7] : memref<32x16xf32, #tpu.memory_space<vmem>>, vector<2x16xf32>
    tpu.vector_store %arg9[%c0_6, %c0_7], %9 {strides = array<i32>} : memref<32x16xf32, #tpu.memory_space<vmem>>, vector<2x16xf32>,
    %11 = vector.extract_strided_slice %8 {offsets = [0, 16], sizes = [2, 16], strides = [1, 1]} : vector<2x256xf32> to vector<2x16xf32>
    %c2 = arith.constant 2 : index
    %c0_8 = arith.constant 0 : index
    %12 = vector.load %arg9[%c2, %c0_8] : memref<32x16xf32, #tpu.memory_space<vmem>>, vector<2x16xf32>
    tpu.vector_store %arg9[%c2, %c0_8], %11 {strides = array<i32>} : memref<32x16xf32, #tpu.memory_space<vmem>>, vector<2x16xf32>,
    %13 = vector.extract_strided_slice %8 {offsets = [0, 32], sizes = [2, 16], strides = [1, 1]} : vector<2x256xf32> to vector<2x16xf32>
    %c4 = arith.constant 4 : index
    %c0_9 = arith.constant 0 : index
    %14 = vector.load %arg9[%c4, %c0_9] : memref<32x16xf32, #tpu.memory_space<vmem>>, vector<2x16xf32>
    tpu.vector_store %arg9[%c4, %c0_9], %13 {strides = array<i32>} : memref<32x16xf32, #tpu.memory_space<vmem>>, vector<2x16xf32>,
    %15 = vector.extract_strided_slice %8 {offsets = [0, 48], sizes = [2, 16], strides = [1, 1]} : vector<2x256xf32> to vector<2x16xf32>
    %c6 = arith.constant 6 : index
    %c0_10 = arith.constant 0 : index
    %16 = vector.load %arg9[%c6, %c0_10] : memref<32x16xf32, #tpu.memory_space<vmem>>, vector<2x16xf32>
    tpu.vector_store %arg9[%c6, %c0_10], %15 {strides = array<i32>} : memref<32x16xf32, #tpu.memory_space<vmem>>, vector<2x16xf32>,
    %17 = vector.extract_strided_slice %8 {offsets = [0, 64], sizes = [2, 16], strides = [1, 1]} : vector<2x256xf32> to vector<2x16xf32>
    %c8 = arith.constant 8 : index
    %c0_11 = arith.constant 0 : index
    %18 = vector.load %arg9[%c8, %c0_11] : memref<32x16xf32, #tpu.memory_space<vmem>>, vector<2x16xf32>
    tpu.vector_store %arg9[%c8, %c0_11], %17 {strides = array<i32>} : memref<32x16xf32, #tpu.memory_space<vmem>>, vector<2x16xf32>,
    %19 = vector.extract_strided_slice %8 {offsets = [0, 80], sizes = [2, 16], strides = [1, 1]} : vector<2x256xf32> to vector<2x16xf32>
    %c10 = arith.constant 10 : index
    %c0_12 = arith.constant 0 : index
    %20 = vector.load %arg9[%c10, %c0_12] : memref<32x16xf32, #tpu.memory_space<vmem>>, vector<2x16xf32>
    tpu.vector_store %arg9[%c10, %c0_12], %19 {strides = array<i32>} : memref<32x16xf32, #tpu.memory_space<vmem>>, vector<2x16xf32>,
    %21 = vector.extract_strided_slice %8 {offsets = [0, 96], sizes = [2, 16], strides = [1, 1]} : vector<2x256xf32> to vector<2x16xf32>
    %c12 = arith.constant 12 : index
    %c0_13 = arith.constant 0 : index
    %22 = vector.load %arg9[%c12, %c0_13] : memref<32x16xf32, #tpu.memory_space<vmem>>, vector<2x16xf32>
    tpu.vector_store %arg9[%c12, %c0_13], %21 {strides = array<i32>} : memref<32x16xf32, #tpu.memory_space<vmem>>, vector<2x16xf32>,
    %23 = vector.extract_strided_slice %8 {offsets = [0, 112], sizes = [2, 16], strides = [1, 1]} : vector<2x256xf32> to vector<2x16xf32>
    %c14 = arith.constant 14 : index
    %c0_14 = arith.constant 0 : index
    %24 = vector.load %arg9[%c14, %c0_14] : memref<32x16xf32, #tpu.memory_space<vmem>>, vector<2x16xf32>
    tpu.vector_store %arg9[%c14, %c0_14], %23 {strides = array<i32>} : memref<32x16xf32, #tpu.memory_space<vmem>>, vector<2x16xf32>,
    %25 = vector.extract_strided_slice %8 {offsets = [0, 128], sizes = [2, 16], strides = [1, 1]} : vector<2x256xf32> to vector<2x16xf32>
    %c16 = arith.constant 16 : index
    %c0_15 = arith.constant 0 : index
    %26 = vector.load %arg9[%c16, %c0_15] : memref<32x16xf32, #tpu.memory_space<vmem>>, vector<2x16xf32>
    tpu.vector_store %arg9[%c16, %c0_15], %25 {strides = array<i32>} : memref<32x16xf32, #tpu.memory_space<vmem>>, vector<2x16xf32>,
    %27 = vector.extract_strided_slice %8 {offsets = [0, 144], sizes = [2, 16], strides = [1, 1]} : vector<2x256xf32> to vector<2x16xf32>
    %c18 = arith.constant 18 : index
    %c0_16 = arith.constant 0 : index
    %28 = vector.load %arg9[%c18, %c0_16] : memref<32x16xf32, #tpu.memory_space<vmem>>, vector<2x16xf32>
    tpu.vector_store %arg9[%c18, %c0_16], %27 {strides = array<i32>} : memref<32x16xf32, #tpu.memory_space<vmem>>, vector<2x16xf32>,
    %29 = vector.extract_strided_slice %8 {offsets = [0, 160], sizes = [2, 16], strides = [1, 1]} : vector<2x256xf32> to vector<2x16xf32>
    %c20 = arith.constant 20 : index
    %c0_17 = arith.constant 0 : index
    %30 = vector.load %arg9[%c20, %c0_17] : memref<32x16xf32, #tpu.memory_space<vmem>>, vector<2x16xf32>
    tpu.vector_store %arg9[%c20, %c0_17], %29 {strides = array<i32>} : memref<32x16xf32, #tpu.memory_space<vmem>>, vector<2x16xf32>,
    %31 = vector.extract_strided_slice %8 {offsets = [0, 176], sizes = [2, 16], strides = [1, 1]} : vector<2x256xf32> to vector<2x16xf32>
    %c22 = arith.constant 22 : index
    %c0_18 = arith.constant 0 : index
    %32 = vector.load %arg9[%c22, %c0_18] : memref<32x16xf32, #tpu.memory_space<vmem>>, vector<2x16xf32>
    tpu.vector_store %arg9[%c22, %c0_18], %31 {strides = array<i32>} : memref<32x16xf32, #tpu.memory_space<vmem>>, vector<2x16xf32>,
    %33 = vector.extract_strided_slice %8 {offsets = [0, 192], sizes = [2, 16], strides = [1, 1]} : vector<2x256xf32> to vector<2x16xf32>
    %c24 = arith.constant 24 : index
    %c0_19 = arith.constant 0 : index
    %34 = vector.load %arg9[%c24, %c0_19] : memref<32x16xf32, #tpu.memory_space<vmem>>, vector<2x16xf32>
    tpu.vector_store %arg9[%c24, %c0_19], %33 {strides = array<i32>} : memref<32x16xf32, #tpu.memory_space<vmem>>, vector<2x16xf32>,
    %35 = vector.extract_strided_slice %8 {offsets = [0, 208], sizes = [2, 16], strides = [1, 1]} : vector<2x256xf32> to vector<2x16xf32>
    %c26 = arith.constant 26 : index
    %c0_20 = arith.constant 0 : index
    %36 = vector.load %arg9[%c26, %c0_20] : memref<32x16xf32, #tpu.memory_space<vmem>>, vector<2x16xf32>
    tpu.vector_store %arg9[%c26, %c0_20], %35 {strides = array<i32>} : memref<32x16xf32, #tpu.memory_space<vmem>>, vector<2x16xf32>,
    %37 = vector.extract_strided_slice %8 {offsets = [0, 224], sizes = [2, 16], strides = [1, 1]} : vector<2x256xf32> to vector<2x16xf32>
    %c28 = arith.constant 28 : index
    %c0_21 = arith.constant 0 : index
    %38 = vector.load %arg9[%c28, %c0_21] : memref<32x16xf32, #tpu.memory_space<vmem>>, vector<2x16xf32>
    tpu.vector_store %arg9[%c28, %c0_21], %37 {strides = array<i32>} : memref<32x16xf32, #tpu.memory_space<vmem>>, vector<2x16xf32>,
    %39 = vector.extract_strided_slice %8 {offsets = [0, 240], sizes = [2, 16], strides = [1, 1]} : vector<2x256xf32> to vector<2x16xf32>
    %c30 = arith.constant 30 : index
    %c0_22 = arith.constant 0 : index
    %40 = vector.load %arg9[%c30, %c0_22] : memref<32x16xf32, #tpu.memory_space<vmem>>, vector<2x16xf32>
    tpu.vector_store %arg9[%c30, %c0_22], %39 {strides = array<i32>} : memref<32x16xf32, #tpu.memory_space<vmem>>, vector<2x16xf32>,
    %c0_23 = arith.constant 0 : index
    %c0_24 = arith.constant 0 : index
    %41 = vector.load %arg9[%c0_23, %c0_24] : memref<32x16xf32, #tpu.memory_space<vmem>>, vector<32x16xf32>
    %c0_25 = arith.constant 0 : index
    %c0_26 = arith.constant 0 : index
    %42 = vector.load %arg4[%c0_25, %c0_26] : memref<16x32xf32, #tpu.memory_space<vmem>>, vector<16x32xf32>
    %cst_27 = arith.constant dense<0.000000e+00> : vector<32x32xf32>
    %43 = tpu.matmul %41, %42, %cst_27 {dimension_numbers = #tpu.dot_dimension_numbers<[1], [0], [0], [1], [0, 0, 1, 1], [], []>} : vector<32x16xf32>, vector<16x32xf32>, vector<32x32xf32> -> vector<32x32xf32>
    %44 = vector.extract_strided_slice %43 {offsets = [0, 0], sizes = [32, 8], strides = [1, 1]} : vector<32x32xf32> to vector<32x8xf32>
    %c0_28 = arith.constant 0 : index
    %c0_29 = arith.constant 0 : index
    %45 = vector.load %arg10[%c0_28, %c0_29] : memref<128x8xf32, #tpu.memory_space<vmem>>, vector<32x8xf32>
    tpu.vector_store %arg10[%c0_28, %c0_29], %44 {strides = array<i32>} : memref<128x8xf32, #tpu.memory_space<vmem>>, vector<32x8xf32>,
    %46 = vector.extract_strided_slice %43 {offsets = [0, 8], sizes = [32, 8], strides = [1, 1]} : vector<32x32xf32> to vector<32x8xf32>
    %c32 = arith.constant 32 : index
    %c0_30 = arith.constant 0 : index
    %47 = vector.load %arg10[%c32, %c0_30] : memref<128x8xf32, #tpu.memory_space<vmem>>, vector<32x8xf32>
    tpu.vector_store %arg10[%c32, %c0_30], %46 {strides = array<i32>} : memref<128x8xf32, #tpu.memory_space<vmem>>, vector<32x8xf32>,
    %48 = vector.extract_strided_slice %43 {offsets = [0, 16], sizes = [32, 8], strides = [1, 1]} : vector<32x32xf32> to vector<32x8xf32>
    %c64 = arith.constant 64 : index
    %c0_31 = arith.constant 0 : index
    %49 = vector.load %arg10[%c64, %c0_31] : memref<128x8xf32, #tpu.memory_space<vmem>>, vector<32x8xf32>
    tpu.vector_store %arg10[%c64, %c0_31], %48 {strides = array<i32>} : memref<128x8xf32, #tpu.memory_space<vmem>>, vector<32x8xf32>,
    %50 = vector.extract_strided_slice %43 {offsets = [0, 24], sizes = [32, 8], strides = [1, 1]} : vector<32x32xf32> to vector<32x8xf32>
    %c96 = arith.constant 96 : index
    %c0_32 = arith.constant 0 : index
    %51 = vector.load %arg10[%c96, %c0_32] : memref<128x8xf32, #tpu.memory_space<vmem>>, vector<32x8xf32>
    tpu.vector_store %arg10[%c96, %c0_32], %50 {strides = array<i32>} : memref<128x8xf32, #tpu.memory_space<vmem>>, vector<32x8xf32>,
    %c0_33 = arith.constant 0 : index
    %c0_34 = arith.constant 0 : index
    %52 = vector.load %arg5[%c0_33, %c0_34] : memref<3x8xf32, #tpu.memory_space<vmem>>, vector<3x8xf32>
    %c0_35 = arith.constant 0 : index
    %c0_36 = arith.constant 0 : index
    %53 = vector.load %arg10[%c0_35, %c0_36] : memref<128x8xf32, #tpu.memory_space<vmem>>, vector<128x8xf32>
    %54 = vector.extract_strided_slice %52 {offsets = [0, 0], sizes = [1, 8], strides = [1, 1]} : vector<3x8xf32> to vector<1x8xf32>
    %55 = vector.broadcast %54 : vector<1x8xf32> to vector<128x8xf32>
    %56 = arith.addf %53, %55 : vector<128x8xf32>
    %cst_37 = arith.constant dense<0.000000e+00> : vector<8xf32>
    %57 = vector.multi_reduction <add>, %56, %cst_37 [0] : vector<128x8xf32> to vector<8xf32>
    %58 = vector.shape_cast %57 : vector<8xf32> to vector<1x8xf32>
    %cst_38 = arith.constant 7.812500e-03 : f32
    %59 = vector.broadcast %cst_38 : f32 to vector<1x8xf32>
    %60 = arith.mulf %58, %59 : vector<1x8xf32>
    %61 = vector.broadcast %60 : vector<1x8xf32> to vector<128x8xf32>
    %62 = arith.subf %56, %61 : vector<128x8xf32>
    %63 = arith.mulf %62, %62 : vector<128x8xf32>
    %cst_39 = arith.constant dense<0.000000e+00> : vector<8xf32>
    %64 = vector.multi_reduction <add>, %63, %cst_39 [0] : vector<128x8xf32> to vector<8xf32>
    %65 = vector.shape_cast %64 : vector<8xf32> to vector<1x8xf32>
    %cst_40 = arith.constant 7.812500e-03 : f32
    %66 = vector.broadcast %cst_40 : f32 to vector<1x8xf32>
    %67 = arith.mulf %65, %66 : vector<1x8xf32>
    %cst_41 = arith.constant 9.99999974E-6 : f32
    %68 = vector.broadcast %cst_41 : f32 to vector<1x8xf32>
    %69 = arith.addf %67, %68 : vector<1x8xf32>
    %70 = math.rsqrt %69 : vector<1x8xf32>
    %71 = vector.broadcast %70 : vector<1x8xf32> to vector<128x8xf32>
    %72 = arith.mulf %62, %71 : vector<128x8xf32>
    %73 = vector.extract_strided_slice %52 {offsets = [1, 0], sizes = [1, 8], strides = [1, 1]} : vector<3x8xf32> to vector<1x8xf32>
    %74 = vector.broadcast %73 : vector<1x8xf32> to vector<128x8xf32>
    %75 = arith.mulf %72, %74 : vector<128x8xf32>
    %76 = vector.extract_strided_slice %52 {offsets = [2, 0], sizes = [1, 8], strides = [1, 1]} : vector<3x8xf32> to vector<1x8xf32>
    %77 = vector.broadcast %76 : vector<1x8xf32> to vector<128x8xf32>
    %78 = arith.addf %75, %77 : vector<128x8xf32>
    %cst_42 = arith.constant 2.000000e-01 : f32
    %79 = vector.broadcast %cst_42 : f32 to vector<128x8xf32>
    %80 = arith.mulf %79, %78 : vector<128x8xf32>
    %81 = arith.maximumf %78, %80 : vector<128x8xf32>
    %c0_43 = arith.constant 0 : index
    %c0_44 = arith.constant 0 : index
    %82 = vector.load %arg6[%c0_43, %c0_44] : memref<8x16xf32, #tpu.memory_space<vmem>>, vector<8x16xf32>
    %cst_45 = arith.constant dense<0.000000e+00> : vector<128x16xf32>
    %83 = tpu.matmul %81, %82, %cst_45 {dimension_numbers = #tpu.dot_dimension_numbers<[1], [0], [0], [1], [0, 0, 1, 1], [], []>} : vector<128x8xf32>, vector<8x16xf32>, vector<128x16xf32> -> vector<128x16xf32>
    %c0_46 = arith.constant 0 : index
    %c0_47 = arith.constant 0 : index
    %84 = vector.load %arg7[%c0_46, %c0_47] : memref<3x16xf32, #tpu.memory_space<vmem>>, vector<3x16xf32>
    %85 = vector.extract_strided_slice %84 {offsets = [0, 0], sizes = [1, 16], strides = [1, 1]} : vector<3x16xf32> to vector<1x16xf32>
    %86 = vector.broadcast %85 : vector<1x16xf32> to vector<128x16xf32>
    %87 = arith.addf %83, %86 : vector<128x16xf32>
    %cst_48 = arith.constant dense<0.000000e+00> : vector<16xf32>
    %88 = vector.multi_reduction <add>, %87, %cst_48 [0] : vector<128x16xf32> to vector<16xf32>
    %89 = vector.shape_cast %88 : vector<16xf32> to vector<1x16xf32>
    %90 = vector.extract_strided_slice %89 {offsets = [0, 0], sizes = [1, 4], strides = [1, 1]} : vector<1x16xf32> to vector<1x4xf32>
    %91 = vector.extract_strided_slice %89 {offsets = [0, 4], sizes = [1, 4], strides = [1, 1]} : vector<1x16xf32> to vector<1x4xf32>
    %92 = arith.addf %90, %91 : vector<1x4xf32>
    %93 = vector.extract_strided_slice %89 {offsets = [0, 8], sizes = [1, 4], strides = [1, 1]} : vector<1x16xf32> to vector<1x4xf32>
    %94 = arith.addf %92, %93 : vector<1x4xf32>
    %95 = vector.extract_strided_slice %89 {offsets = [0, 12], sizes = [1, 4], strides = [1, 1]} : vector<1x16xf32> to vector<1x4xf32>
    %96 = arith.addf %94, %95 : vector<1x4xf32>
    %97 = tpu.concatenate %96, %96, %96, %96 in 1 : vector<1x4xf32>, vector<1x4xf32>, vector<1x4xf32>, vector<1x4xf32> -> vector<1x16xf32>
    %cst_49 = arith.constant 0.001953125 : f32
    %98 = vector.broadcast %cst_49 : f32 to vector<1x16xf32>
    %99 = arith.mulf %97, %98 : vector<1x16xf32>
    %100 = vector.broadcast %99 : vector<1x16xf32> to vector<128x16xf32>
    %101 = arith.subf %87, %100 : vector<128x16xf32>
    %102 = arith.mulf %101, %101 : vector<128x16xf32>
    %cst_50 = arith.constant dense<0.000000e+00> : vector<16xf32>
    %103 = vector.multi_reduction <add>, %102, %cst_50 [0] : vector<128x16xf32> to vector<16xf32>
    %104 = vector.shape_cast %103 : vector<16xf32> to vector<1x16xf32>
    %105 = vector.extract_strided_slice %104 {offsets = [0, 0], sizes = [1, 4], strides = [1, 1]} : vector<1x16xf32> to vector<1x4xf32>
    %106 = vector.extract_strided_slice %104 {offsets = [0, 4], sizes = [1, 4], strides = [1, 1]} : vector<1x16xf32> to vector<1x4xf32>
    %107 = arith.addf %105, %106 : vector<1x4xf32>
    %108 = vector.extract_strided_slice %104 {offsets = [0, 8], sizes = [1, 4], strides = [1, 1]} : vector<1x16xf32> to vector<1x4xf32>
    %109 = arith.addf %107, %108 : vector<1x4xf32>
    %110 = vector.extract_strided_slice %104 {offsets = [0, 12], sizes = [1, 4], strides = [1, 1]} : vector<1x16xf32> to vector<1x4xf32>
    %111 = arith.addf %109, %110 : vector<1x4xf32>
    %112 = tpu.concatenate %111, %111, %111, %111 in 1 : vector<1x4xf32>, vector<1x4xf32>, vector<1x4xf32>, vector<1x4xf32> -> vector<1x16xf32>
    %cst_51 = arith.constant 0.001953125 : f32
    %113 = vector.broadcast %cst_51 : f32 to vector<1x16xf32>
    %114 = arith.mulf %112, %113 : vector<1x16xf32>
    %cst_52 = arith.constant 9.99999974E-6 : f32
    %115 = vector.broadcast %cst_52 : f32 to vector<1x16xf32>
    %116 = arith.addf %114, %115 : vector<1x16xf32>
    %117 = math.rsqrt %116 : vector<1x16xf32>
    %118 = vector.broadcast %117 : vector<1x16xf32> to vector<128x16xf32>
    %119 = arith.mulf %101, %118 : vector<128x16xf32>
    %120 = vector.extract_strided_slice %84 {offsets = [1, 0], sizes = [1, 16], strides = [1, 1]} : vector<3x16xf32> to vector<1x16xf32>
    %121 = vector.broadcast %120 : vector<1x16xf32> to vector<128x16xf32>
    %122 = arith.mulf %119, %121 : vector<128x16xf32>
    %123 = vector.extract_strided_slice %84 {offsets = [2, 0], sizes = [1, 16], strides = [1, 1]} : vector<3x16xf32> to vector<1x16xf32>
    %124 = vector.broadcast %123 : vector<1x16xf32> to vector<128x16xf32>
    %125 = arith.addf %122, %124 : vector<128x16xf32>
    %cst_53 = arith.constant 2.000000e-01 : f32
    %126 = vector.broadcast %cst_53 : f32 to vector<128x16xf32>
    %127 = arith.mulf %126, %125 : vector<128x16xf32>
    %128 = arith.maximumf %125, %127 : vector<128x16xf32>
    %129 = arith.truncf %128 : vector<128x16xf32> to vector<128x16xbf16>
    %c0_54 = arith.constant 0 : index
    %c0_55 = arith.constant 0 : index
    %130 = vector.load %arg8[%c0_54, %c0_55] : memref<128x16xbf16, #tpu.memory_space<vmem>>, vector<128x16xbf16>
    tpu.vector_store %arg8[%c0_54, %c0_55], %129 {strides = array<i32>} : memref<128x16xbf16, #tpu.memory_space<vmem>>, vector<128x16xbf16>,
    return
  }
  func.func @transform_0(%arg0: i32) -> (i32, i32) {
    %c0_i32 = arith.constant 0 : i32
    %c0_i32_0 = arith.constant 0 : i32
    %c0_i32_1 = arith.constant 0 : i32
    return %c0_i32, %c0_i32_0 : i32, i32
  }
  func.func @transform_1(%arg0: i32) -> (i32, i32) {
    %c0_i32 = arith.constant 0 : i32
    %c0_i32_0 = arith.constant 0 : i32
    %c0_i32_1 = arith.constant 0 : i32
    return %c0_i32, %c0_i32_0 : i32, i32
  }
  func.func @transform_2(%arg0: i32) -> (i32, i32) {
    %c0_i32 = arith.constant 0 : i32
    %c0_i32_0 = arith.constant 0 : i32
    %c0_i32_1 = arith.constant 0 : i32
    return %c0_i32, %c0_i32_0 : i32, i32
  }
  func.func @transform_3(%arg0: i32) -> (i32, i32) {
    %c0_i32 = arith.constant 0 : i32
    %c0_i32_0 = arith.constant 0 : i32
    %c0_i32_1 = arith.constant 0 : i32
    return %c0_i32, %c0_i32_0 : i32, i32
  }
  func.func @transform_4(%arg0: i32) -> (i32, i32) {
    %c0_i32 = arith.constant 0 : i32
    %c0_i32_0 = arith.constant 0 : i32
    %c0_i32_1 = arith.constant 0 : i32
    return %c0_i32, %c0_i32_0 : i32, i32
  }
  func.func @transform_5(%arg0: i32) -> (i32, i32) {
    %c0_i32 = arith.constant 0 : i32
    %c0_i32_0 = arith.constant 0 : i32
    %c0_i32_1 = arith.constant 0 : i32
    return %c0_i32, %c0_i32_0 : i32, i32
  }
  func.func @transform_6(%arg0: i32) -> (i32, i32) {
    %c0_i32 = arith.constant 0 : i32
    %c0_i32_0 = arith.constant 0 : i32
    %c0_i32_1 = arith.constant 0 : i32
    return %c0_i32, %c0_i32_0 : i32, i32
  }
  func.func @transform_7(%arg0: i32) -> (i32, i32) {
    %c0_i32 = arith.constant 0 : i32
    %c0_i32_0 = arith.constant 0 : i32
    %c0_i32_1 = arith.constant 0 : i32
    return %c0_i32, %c0_i32_0 : i32, i32
  }
}

module attributes {stable_mosaic.version = 11 : i64} {
  func.func @_conv3x3_kernel(%arg0: i32, %arg1: memref<1x3x16x128xbf16, #tpu.memory_space<vmem>>, %arg2: memref<3x128x128xbf16, #tpu.memory_space<vmem>>, %arg3: memref<1x128xf32, #tpu.memory_space<vmem>>, %arg4: memref<1x16x128xf32, #tpu.memory_space<vmem>>) attributes {dimension_semantics = [#tpu.dimension_semantics<parallel>], iteration_bounds = array<i64: 2>, scalar_prefetch = 0 : i64, scratch_operands = 0 : i64, tpu.core_type = #tpu.core_type<tc>, window_params = [{transform_indices = @transform_0, window_bounds = array<i64: 1, 3, 16, 128>}, {pipeline_mode = #tpu.pipeline_mode<synchronous>, transform_indices = @transform_1, window_bounds = array<i64: 3, 128, 128>}, {pipeline_mode = #tpu.pipeline_mode<synchronous>, transform_indices = @transform_2, window_bounds = array<i64: 1, 128>}, {transform_indices = @transform_3, window_bounds = array<i64: 1, 16, 128>}]} {
    %c0 = arith.constant 0 : index
    %c0_0 = arith.constant 0 : index
    %0 = vector.load %arg3[%c0, %c0_0] : memref<1x128xf32, #tpu.memory_space<vmem>>, vector<1x128xf32>
    %c0_1 = arith.constant 0 : index
    %c0_2 = arith.constant 0 : index
    %c0_3 = arith.constant 0 : index
    %c0_4 = arith.constant 0 : index
    %1 = vector.load %arg1[%c0_1, %c0_2, %c0_3, %c0_4] : memref<1x3x16x128xbf16, #tpu.memory_space<vmem>>, vector<1x1x16x128xbf16>
    %2 = vector.shape_cast %1 : vector<1x1x16x128xbf16> to vector<16x128xbf16>
    %c0_5 = arith.constant 0 : index
    %c0_6 = arith.constant 0 : index
    %c0_7 = arith.constant 0 : index
    %3 = vector.load %arg2[%c0_5, %c0_6, %c0_7] : memref<3x128x128xbf16, #tpu.memory_space<vmem>>, vector<1x128x128xbf16>
    %4 = vector.shape_cast %3 : vector<1x128x128xbf16> to vector<128x128xbf16>
    %cst = arith.constant dense<0.000000e+00> : vector<16x128xf32>
    %5 = tpu.matmul %2, %4, %cst {dimension_numbers = #tpu.dot_dimension_numbers<[1], [0], [0], [1], [0, 0, 1, 1], [], []>} : vector<16x128xbf16>, vector<128x128xbf16>, vector<16x128xf32> -> vector<16x128xf32>
    %6 = vector.broadcast %0 : vector<1x128xf32> to vector<16x128xf32>
    %7 = arith.addf %6, %5 : vector<16x128xf32>
    %c0_8 = arith.constant 0 : index
    %c1 = arith.constant 1 : index
    %c0_9 = arith.constant 0 : index
    %c0_10 = arith.constant 0 : index
    %8 = vector.load %arg1[%c0_8, %c1, %c0_9, %c0_10] : memref<1x3x16x128xbf16, #tpu.memory_space<vmem>>, vector<1x1x16x128xbf16>
    %9 = vector.shape_cast %8 : vector<1x1x16x128xbf16> to vector<16x128xbf16>
    %c1_11 = arith.constant 1 : index
    %c0_12 = arith.constant 0 : index
    %c0_13 = arith.constant 0 : index
    %10 = vector.load %arg2[%c1_11, %c0_12, %c0_13] : memref<3x128x128xbf16, #tpu.memory_space<vmem>>, vector<1x128x128xbf16>
    %11 = vector.shape_cast %10 : vector<1x128x128xbf16> to vector<128x128xbf16>
    %cst_14 = arith.constant dense<0.000000e+00> : vector<16x128xf32>
    %12 = tpu.matmul %9, %11, %cst_14 {dimension_numbers = #tpu.dot_dimension_numbers<[1], [0], [0], [1], [0, 0, 1, 1], [], []>} : vector<16x128xbf16>, vector<128x128xbf16>, vector<16x128xf32> -> vector<16x128xf32>
    %13 = arith.addf %7, %12 : vector<16x128xf32>
    %c0_15 = arith.constant 0 : index
    %c2 = arith.constant 2 : index
    %c0_16 = arith.constant 0 : index
    %c0_17 = arith.constant 0 : index
    %14 = vector.load %arg1[%c0_15, %c2, %c0_16, %c0_17] : memref<1x3x16x128xbf16, #tpu.memory_space<vmem>>, vector<1x1x16x128xbf16>
    %15 = vector.shape_cast %14 : vector<1x1x16x128xbf16> to vector<16x128xbf16>
    %c2_18 = arith.constant 2 : index
    %c0_19 = arith.constant 0 : index
    %c0_20 = arith.constant 0 : index
    %16 = vector.load %arg2[%c2_18, %c0_19, %c0_20] : memref<3x128x128xbf16, #tpu.memory_space<vmem>>, vector<1x128x128xbf16>
    %17 = vector.shape_cast %16 : vector<1x128x128xbf16> to vector<128x128xbf16>
    %cst_21 = arith.constant dense<0.000000e+00> : vector<16x128xf32>
    %18 = tpu.matmul %15, %17, %cst_21 {dimension_numbers = #tpu.dot_dimension_numbers<[1], [0], [0], [1], [0, 0, 1, 1], [], []>} : vector<16x128xbf16>, vector<128x128xbf16>, vector<16x128xf32> -> vector<16x128xf32>
    %19 = arith.addf %13, %18 : vector<16x128xf32>
    %c0_22 = arith.constant 0 : index
    %c0_23 = arith.constant 0 : index
    %c0_24 = arith.constant 0 : index
    %20 = vector.load %arg4[%c0_22, %c0_23, %c0_24] : memref<1x16x128xf32, #tpu.memory_space<vmem>>, vector<1x16x128xf32>
    %21 = vector.shape_cast %20 : vector<1x16x128xf32> to vector<16x128xf32>
    %22 = vector.shape_cast %19 : vector<16x128xf32> to vector<1x16x128xf32>
    tpu.vector_store %arg4[%c0_22, %c0_23, %c0_24], %22 {strides = array<i32>} : memref<1x16x128xf32, #tpu.memory_space<vmem>>, vector<1x16x128xf32>,
    return
  }
  func.func @transform_0(%arg0: i32) -> (i32, i32, i32, i32) {
    %c0_i32 = arith.constant 0 : i32
    %c0_i32_0 = arith.constant 0 : i32
    %c0_i32_1 = arith.constant 0 : i32
    %c0_i32_2 = arith.constant 0 : i32
    return %arg0, %c0_i32, %c0_i32_0, %c0_i32_1 : i32, i32, i32, i32
  }
  func.func @transform_1(%arg0: i32) -> (i32, i32, i32) {
    %c0_i32 = arith.constant 0 : i32
    %c0_i32_0 = arith.constant 0 : i32
    %c0_i32_1 = arith.constant 0 : i32
    %c0_i32_2 = arith.constant 0 : i32
    return %c0_i32, %c0_i32_0, %c0_i32_1 : i32, i32, i32
  }
  func.func @transform_2(%arg0: i32) -> (i32, i32) {
    %c0_i32 = arith.constant 0 : i32
    %c0_i32_0 = arith.constant 0 : i32
    %c0_i32_1 = arith.constant 0 : i32
    return %c0_i32, %c0_i32_0 : i32, i32
  }
  func.func @transform_3(%arg0: i32) -> (i32, i32, i32) {
    %c0_i32 = arith.constant 0 : i32
    %c0_i32_0 = arith.constant 0 : i32
    %c0_i32_1 = arith.constant 0 : i32
    return %arg0, %c0_i32, %c0_i32_0 : i32, i32, i32
  }
}

</mosaic_0001>

<llo_original>
// kernel: decoder_forward.2
$region0: #{decoder_forward.2}
  #allocation0 [shape = 'u32[]', space=smem, size = 0x4, offset = 0x4, fixed_abs, tag = 'smem constant byte address 0x4 - core index']
  #allocation1 [shape = 'u32[72,128]{1,0:T(1,128)}', space=vmem, size = 0x9000, scoped, tag = 'internal scratch']
  #allocation2 [shape = 'f32[32,16]{1,0:T(8,128)}', space=vmem, size = 0x4000, scoped, tag = 'scratch operand']
  #allocation3 [shape = 'f32[128,8]{1,0:T(8,128)}', space=vmem, size = 0x10000, scoped, tag = 'scratch operand']
  %s0 = inlined_call_operand.hbm [shape: f32[2,8], index: 0, kind: input, shape index: {}]
  %s1 = inlined_call_operand.hbm [shape: f32[8,256], index: 1, kind: input, shape index: {}]
  %s2 = inlined_call_operand.vmem [shape: f32[1,256], index: 2, kind: input, shape index: {}]
  %s3 = inlined_call_operand.hbm [shape: f32[16,32], index: 3, kind: input, shape index: {}]
  %s4 = inlined_call_operand.hbm [shape: f32[3,8], index: 4, kind: input, shape index: {}]
  %s5 = inlined_call_operand.hbm [shape: f32[8,16], index: 5, kind: input, shape index: {}]
  %s6 = inlined_call_operand.hbm [shape: f32[3,16], index: 6, kind: input, shape index: {}]
  %s7 = inlined_call_operand.vmem [shape: bf16[128,16], index: 7, kind: output, shape index: {}]
  %s8 = sld [smem:[#allocation0]]
  $region62: #{decoder_forward.2} parent=0
    _
  %s10 = ssub.s32 1, %s8
  %s11 = scalar_select 0, %s10, %s8
  $region1: #{decoder_forward.2} parent=0
    #allocation4 [shape = 'u8[1024]{0}', space=vmem, size = 0x400, scoped, tag = 'input window, operand 0, single buffered']
    #allocation5 [shape = 's32[1]{0}', space=sflag, size = 0x4, scoped, tag = 'scoped memory for decoder_forward.2']
    #allocation6 [shape = 'u8[8192]{0}', space=vmem, size = 0x2000, scoped, tag = 'input window, operand 1, single buffered']
    #allocation7 [shape = 's32[1]{0}', space=sflag, size = 0x4, scoped, tag = 'scoped memory for decoder_forward.2']
    #allocation8 [shape = 'u8[8192]{0}', space=vmem, size = 0x2000, scoped, tag = 'input window, operand 3, single buffered']
    #allocation9 [shape = 'u8[2048]{0}', space=vmem, size = 0x800, scoped, tag = 'input window, operand 4, single buffered']
    #allocation10 [shape = 's32[1]{0}', space=sflag, size = 0x4, scoped, tag = 'scoped memory for decoder_forward.2']
    #allocation11 [shape = 'u8[4096]{0}', space=vmem, size = 0x1000, scoped, tag = 'input window, operand 5, single buffered']
    #allocation12 [shape = 'u8[2048]{0}', space=vmem, size = 0x800, scoped, tag = 'input window, operand 6, single buffered']
    #allocation13 [shape = 's32[1]{0}', space=sflag, size = 0x4, scoped, tag = 'scoped memory for decoder_forward.2']
    %12 = vsyncpa [#allocation5], 0
    %13 = vsyncpa [#allocation7], 0
    %14 = vsyncpa [#allocation10], 0
    %15 = vsyncpa [#allocation13], 0
    // Predicated region
    $region2: #{decoder_forward.2} parent=1 // pred_check
      _
    $region3: #{decoder_forward.2} parent=1 // pred_check_branch
      %17 = sbr.rel (0) target = $region5
    $region4: #{decoder_forward.2} parent=1 // pred_region
      %19 = vsyncadd [#allocation5], 0
      %s21 = sshll.u32 %s0, 4
      %s22 = int_to_ptr.hbm [resolvable:$true] %s21
      %s23 = sshll.u32 [#allocation4], 4
      %s24 = int_to_ptr.vmem [resolvable:$true] %s23
      %26 = dma.hbm_to_vmem [thread:$0]  %s22, 32, %s24, [#allocation5]
    $region5: #{decoder_forward.2} parent=1 // pred_fallthru
      _
    // Predicated region
    $region6: #{decoder_forward.2} parent=1 // pred_check
      _
    $region7: #{decoder_forward.2} parent=1 // pred_check_branch
      %28 = sbr.rel (0) target = $region9
    $region8: #{decoder_forward.2} parent=1 // pred_region
      %30 = vsyncadd [#allocation7], 0
      %s32 = sshll.u32 %s1, 4
      %s33 = int_to_ptr.hbm [resolvable:$true] %s32
      %s34 = sshll.u32 [#allocation6], 4
      %s35 = int_to_ptr.vmem [resolvable:$true] %s34
      %37 = dma.hbm_to_vmem [thread:$0]  %s33, 256, %s35, [#allocation7]
    $region9: #{decoder_forward.2} parent=1 // pred_fallthru
      _
    // Predicated region
    $region10: #{decoder_forward.2} parent=1 // pred_check
      _
    $region11: #{decoder_forward.2} parent=1 // pred_check_branch
      %39 = sbr.rel (0) target = $region13
    $region12: #{decoder_forward.2} parent=1 // pred_region
      _
    $region13: #{decoder_forward.2} parent=1 // pred_fallthru
      _
    // Predicated region
    $region14: #{decoder_forward.2} parent=1 // pred_check
      _
    $region15: #{decoder_forward.2} parent=1 // pred_check_branch
      %41 = sbr.rel (0) target = $region17
    $region16: #{decoder_forward.2} parent=1 // pred_region
      %43 = vsyncadd [#allocation7], 0
      %s44 = sshll.u32 %s3, 4
      %s45 = int_to_ptr.hbm [resolvable:$true] %s44
      %s46 = sshll.u32 [#allocation8], 4
      %s47 = int_to_ptr.vmem [resolvable:$true] %s46
      %52 = dma.hbm_to_vmem [thread:$0]  %s45, 256, %s47, [#allocation7], 128, 128, 8
    $region17: #{decoder_forward.2} parent=1 // pred_fallthru
      _
    // Predicated region
    $region18: #{decoder_forward.2} parent=1 // pred_check
      _
    $region19: #{decoder_forward.2} parent=1 // pred_check_branch
      %54 = sbr.rel (0) target = $region21
    $region20: #{decoder_forward.2} parent=1 // pred_region
      %56 = vsyncadd [#allocation10], 0
      %s58 = sshll.u32 %s4, 4
      %s59 = int_to_ptr.hbm [resolvable:$true] %s58
      %s60 = sshll.u32 [#allocation9], 4
      %s61 = int_to_ptr.vmem [resolvable:$true] %s60
      %63 = dma.hbm_to_vmem [thread:$0]  %s59, 64, %s61, [#allocation10]
    $region21: #{decoder_forward.2} parent=1 // pred_fallthru
      _
    // Predicated region
    $region22: #{decoder_forward.2} parent=1 // pred_check
      _
    $region23: #{decoder_forward.2} parent=1 // pred_check_branch
      %65 = sbr.rel (0) target = $region25
    $region24: #{decoder_forward.2} parent=1 // pred_region
      %67 = vsyncadd [#allocation10], 0
      %s69 = sshll.u32 %s5, 4
      %s70 = int_to_ptr.hbm [resolvable:$true] %s69
      %s71 = sshll.u32 [#allocation11], 4
      %s72 = int_to_ptr.vmem [resolvable:$true] %s71
      %74 = dma.hbm_to_vmem [thread:$0]  %s70, 128, %s72, [#allocation10]
    $region25: #{decoder_forward.2} parent=1 // pred_fallthru
      _
    // Predicated region
    $region26: #{decoder_forward.2} parent=1 // pred_check
      _
    $region27: #{decoder_forward.2} parent=1 // pred_check_branch
      %76 = sbr.rel (0) target = $region29
    $region28: #{decoder_forward.2} parent=1 // pred_region
      %78 = vsyncadd [#allocation13], 0
      %s80 = sshll.u32 %s6, 4
      %s81 = int_to_ptr.hbm [resolvable:$true] %s80
      %s82 = sshll.u32 [#allocation12], 4
      %s83 = int_to_ptr.vmem [resolvable:$true] %s82
      %85 = dma.hbm_to_vmem [thread:$0]  %s81, 64, %s83, [#allocation13]
    $region29: #{decoder_forward.2} parent=1 // pred_fallthru
      _
    // Predicated region
    $region30: #{decoder_forward.2} parent=1 // pred_check
      _
    $region31: #{decoder_forward.2} parent=1 // pred_check_branch
      %87 = sbr.rel (0) target = $region33
    $region32: #{decoder_forward.2} parent=1 // pred_region
      %89 = dma.done [#allocation5], 32
    $region33: #{decoder_forward.2} parent=1 // pred_fallthru
      _
    // Predicated region
    $region34: #{decoder_forward.2} parent=1 // pred_check
      _
    $region35: #{decoder_forward.2} parent=1 // pred_check_branch
      %91 = sbr.rel (0) target = $region37
    $region36: #{decoder_forward.2} parent=1 // pred_region
      %93 = dma.done [#allocation7], 256
    $region37: #{decoder_forward.2} parent=1 // pred_fallthru
      _
    // Predicated region
    $region38: #{decoder_forward.2} parent=1 // pred_check
      _
    $region39: #{decoder_forward.2} parent=1 // pred_check_branch
      %95 = sbr.rel (0) target = $region41
    $region40: #{decoder_forward.2} parent=1 // pred_region
      %97 = dma.done [#allocation7], 256
    $region41: #{decoder_forward.2} parent=1 // pred_fallthru
      _
    // Predicated region
    $region42: #{decoder_forward.2} parent=1 // pred_check
      _
    $region43: #{decoder_forward.2} parent=1 // pred_check_branch
      %99 = sbr.rel (0) target = $region45
    $region44: #{decoder_forward.2} parent=1 // pred_region
      %101 = dma.done [#allocation10], 64
    $region45: #{decoder_forward.2} parent=1 // pred_fallthru
      _
    // Predicated region
    $region46: #{decoder_forward.2} parent=1 // pred_check
      _
    $region47: #{decoder_forward.2} parent=1 // pred_check_branch
      %103 = sbr.rel (0) target = $region49
    $region48: #{decoder_forward.2} parent=1 // pred_region
      %105 = dma.done [#allocation10], 128
    $region49: #{decoder_forward.2} parent=1 // pred_fallthru
      _
    // Predicated region
    $region50: #{decoder_forward.2} parent=1 // pred_check
      _
    $region51: #{decoder_forward.2} parent=1 // pred_check_branch
      %107 = sbr.rel (0) target = $region53
    $region52: #{decoder_forward.2} parent=1 // pred_region
      %109 = dma.done [#allocation13], 64
    $region53: #{decoder_forward.2} parent=1 // pred_fallthru
      _
    %v110 = vld [vmem:[#allocation4] sm:$0x3]
    %v111 = vld [vmem:[#allocation6] sm:$0xff]
    %v112 = vld [vmem:[#allocation6 + $0x8] sm:$0xff]
    %v113 = vld [vmem:[%s2] sm:$0x3]
    %v115 = vperm.slane %v113, 0
    %v116 = vperm.slane %v113, 1
    %vm119 = vcmask 64512
    %v121 = vsel %vm119, %v110, 0
    %123 = vmatpush.msra.mxu0 0.0
    %124 = vmatpush.msra.mxu0 0.0
    %125 = vmatpush.msra.mxu0 0.0
    %126 = vmatpush.msra.mxu0 0.0
    %127 = vmatpush.msra.mxu0 0.0
    %128 = vmatpush.msra.mxu0 0.0
    %129 = vmatpush.msra.mxu0 0.0
    %130 = vmatpush.msra.mxu0 0.0
    %131 = vmatpush.msra.mxu0 0.0
    %132 = vmatpush.msra.mxu0 0.0
    %133 = vmatpush.msra.mxu0 0.0
    %134 = vmatpush.msra.mxu0 0.0
    %135 = vmatpush.msra.mxu0 0.0
    %136 = vmatpush.msra.mxu0 0.0
    %137 = vmatpush.msra.mxu0 0.0
    %138 = vmatpush.msra.mxu0 %v111
    %139 = vmatmul.f32.gmra.mxu0 %v121
    %v140 = vpop.f32.mrf.mxu0
    %v141 = vadd.f32 %v115, %v140
    %142 = vdwg.mxu0
    %143 = vmatpush.msra.mxu0 0.0
    %144 = vmatpush.msra.mxu0 0.0
    %145 = vmatpush.msra.mxu0 0.0
    %146 = vmatpush.msra.mxu0 0.0
    %147 = vmatpush.msra.mxu0 0.0
    %148 = vmatpush.msra.mxu0 0.0
    %149 = vmatpush.msra.mxu0 0.0
    %150 = vmatpush.msra.mxu0 0.0
    %151 = vmatpush.msra.mxu0 0.0
    %152 = vmatpush.msra.mxu0 0.0
    %153 = vmatpush.msra.mxu0 0.0
    %154 = vmatpush.msra.mxu0 0.0
    %155 = vmatpush.msra.mxu0 0.0
    %156 = vmatpush.msra.mxu0 0.0
    %157 = vmatpush.msra.mxu0 0.0
    %158 = vmatpush.msra.mxu0 %v112
    %159 = vmatmul.f32.gmra.mxu0 %v121
    %v160 = vpop.f32.mrf.mxu0
    %v161 = vadd.f32 %v116, %v160
    %162 = vdwg.mxu0
    %v163 = vmul.f32 %v141, 0.01
    %v164 = vmul.f32 %v161, 0.01
    %v165 = vmax.f32 %v141, %v163
    %v166 = vmax.f32 %v161, %v164
    %vm167 = vcmask 123904
    %168 = vst.msk [vmem:[#allocation2] sm:$0x3] %vm167, %v165
    %170 = vrot.lane.b32.xlu0 %v165, 112
    %v171 = vpop.permute.xlu0 %170
    %173 = vst.msk [vmem:[#allocation2 + $0x2] sm:$0x3] %vm167, %v171
    %174 = vrot.lane.b32.xlu0 %v165, 96
    %v175 = vpop.permute.xlu0 %174
    %177 = vst.msk [vmem:[#allocation2 + $0x4] sm:$0x3] %vm167, %v175
    %178 = vrot.lane.b32.xlu0 %v165, 80
    %v179 = vpop.permute.xlu0 %178
    %181 = vst.msk [vmem:[#allocation2 + $0x6] sm:$0x3] %vm167, %v179
    %182 = vrot.lane.b32.xlu0 %v165, 64
    %v183 = vpop.permute.xlu0 %182
    %185 = vst.msk [vmem:[#allocation2 + $0x8] sm:$0x3] %vm167, %v183
    %186 = vrot.lane.b32.xlu0 %v165, 48
    %v187 = vpop.permute.xlu0 %186
    %189 = vst.msk [vmem:[#allocation2 + $0xa] sm:$0x3] %vm167, %v187
    %190 = vrot.lane.b32.xlu0 %v165, 32
    %v191 = vpop.permute.xlu0 %190
    %193 = vst.msk [vmem:[#allocation2 + $0xc] sm:$0x3] %vm167, %v191
    %194 = vrot.lane.b32.xlu0 %v165, 16
    %v195 = vpop.permute.xlu0 %194
    %197 = vst.msk [vmem:[#allocation2 + $0xe] sm:$0x3] %vm167, %v195
    %198 = vst.msk [vmem:[#allocation2 + $0x10] sm:$0x3] %vm167, %v166
    %200 = vrot.lane.b32.xlu0 %v166, 112
    %v201 = vpop.permute.xlu0 %200
    %203 = vst.msk [vmem:[#allocation2 + $0x12] sm:$0x3] %vm167, %v201
    %204 = vrot.lane.b32.xlu0 %v166, 96
    %v205 = vpop.permute.xlu0 %204
    %207 = vst.msk [vmem:[#allocation2 + $0x14] sm:$0x3] %vm167, %v205
    %208 = vrot.lane.b32.xlu0 %v166, 80
    %v209 = vpop.permute.xlu0 %208
    %211 = vst.msk [vmem:[#allocation2 + $0x16] sm:$0x3] %vm167, %v209
    %212 = vrot.lane.b32.xlu0 %v166, 64
    %v213 = vpop.permute.xlu0 %212
    %215 = vst.msk [vmem:[#allocation2 + $0x18] sm:$0x3] %vm167, %v213
    %216 = vrot.lane.b32.xlu0 %v166, 48
    %v217 = vpop.permute.xlu0 %216
    %219 = vst.msk [vmem:[#allocation2 + $0x1a] sm:$0x3] %vm167, %v217
    %220 = vrot.lane.b32.xlu0 %v166, 32
    %v221 = vpop.permute.xlu0 %220
    %223 = vst.msk [vmem:[#allocation2 + $0x1c] sm:$0x3] %vm167, %v221
    %224 = vrot.lane.b32.xlu0 %v166, 16
    %v225 = vpop.permute.xlu0 %224
    %227 = vst.msk [vmem:[#allocation2 + $0x1e] sm:$0x3] %vm167, %v225
    %v228 = vld [vmem:[#allocation2] sm:$0xff]
    %v229 = vld [vmem:[#allocation2 + $0x8] sm:$0xff]
    %v230 = vld [vmem:[#allocation2 + $0x10] sm:$0xff]
    %v231 = vld [vmem:[#allocation2 + $0x18] sm:$0xff]
    %v232 = vld [vmem:[#allocation8] sm:$0xff]
    %v233 = vld [vmem:[#allocation8 + $0x8] sm:$0xff]
    %vm234 = vcmask 130048
    %v236 = vsel %vm234, %v228, 0
    %v239 = vsel %vm234, %v229, 0
    %v242 = vsel %vm234, %v230, 0
    %v245 = vsel %vm234, %v231, 0
    %247 = vmatpush.msra.mxu0 0.0
    %248 = vmatpush.msra.mxu0 0.0
    %249 = vmatpush.msra.mxu0 0.0
    %250 = vmatpush.msra.mxu0 0.0
    %251 = vmatpush.msra.mxu0 0.0
    %252 = vmatpush.msra.mxu0 0.0
    %253 = vmatpush.msra.mxu0 0.0
    %254 = vmatpush.msra.mxu0 0.0
    %255 = vmatpush.msra.mxu0 0.0
    %256 = vmatpush.msra.mxu0 0.0
    %257 = vmatpush.msra.mxu0 0.0
    %258 = vmatpush.msra.mxu0 0.0
    %259 = vmatpush.msra.mxu0 0.0
    %260 = vmatpush.msra.mxu0 0.0
    %261 = vmatpush.msra.mxu0 %v233
    %262 = vmatpush.msra.mxu0 %v232
    %263 = vmatmul.f32.gmra.mxu0 %v236
    %v264 = vpop.f32.mrf.mxu0
    %v265 = vadd.f32 0.0, %v264
    %266 = vmatmul.f32.gmra.mxu0 %v239
    %v267 = vpop.f32.mrf.mxu0
    %v268 = vadd.f32 0.0, %v267
    %269 = vmatmul.f32.gmra.mxu0 %v242
    %v270 = vpop.f32.mrf.mxu0
    %v271 = vadd.f32 0.0, %v270
    %272 = vmatmul.f32.gmra.mxu0 %v245
    %v273 = vpop.f32.mrf.mxu0
    %v274 = vadd.f32 0.0, %v273
    %275 = vdwg.mxu0
    %276 = vst.msk [vmem:[#allocation3] sm:$0xff] %vm119, %v265
    %277 = vst.msk [vmem:[#allocation3 + $0x8] sm:$0xff] %vm119, %v268
    %278 = vst.msk [vmem:[#allocation3 + $0x10] sm:$0xff] %vm119, %v271
    %279 = vst.msk [vmem:[#allocation3 + $0x18] sm:$0xff] %vm119, %v274
    %284 = vrot.lane.b32.xlu0 %v265, 120
    %v285 = vpop.permute.xlu0 %284
    %286 = vrot.lane.b32.xlu0 %v268, 120
    %v287 = vpop.permute.xlu0 %286
    %288 = vrot.lane.b32.xlu0 %v271, 120
    %v289 = vpop.permute.xlu0 %288
    %290 = vrot.lane.b32.xlu0 %v274, 120
    %v291 = vpop.permute.xlu0 %290
    %296 = vst.msk [vmem:[#allocation3 + $0x20] sm:$0xff] %vm119, %v285
    %297 = vst.msk [vmem:[#allocation3 + $0x28] sm:$0xff] %vm119, %v287
    %298 = vst.msk [vmem:[#allocation3 + $0x30] sm:$0xff] %vm119, %v289
    %299 = vst.msk [vmem:[#allocation3 + $0x38] sm:$0xff] %vm119, %v291
    %300 = vrot.lane.b32.xlu0 %v265, 112
    %v301 = vpop.permute.xlu0 %300
    %302 = vrot.lane.b32.xlu0 %v268, 112
    %v303 = vpop.permute.xlu0 %302
    %304 = vrot.lane.b32.xlu0 %v271, 112
    %v305 = vpop.permute.xlu0 %304
    %306 = vrot.lane.b32.xlu0 %v274, 112
    %v307 = vpop.permute.xlu0 %306
    %312 = vst.msk [vmem:[#allocation3 + $0x40] sm:$0xff] %vm119, %v301
    %313 = vst.msk [vmem:[#allocation3 + $0x48] sm:$0xff] %vm119, %v303
    %314 = vst.msk [vmem:[#allocation3 + $0x50] sm:$0xff] %vm119, %v305
    %315 = vst.msk [vmem:[#allocation3 + $0x58] sm:$0xff] %vm119, %v307
    %316 = vrot.lane.b32.xlu0 %v265, 104
    %v317 = vpop.permute.xlu0 %316
    %318 = vrot.lane.b32.xlu0 %v268, 104
    %v319 = vpop.permute.xlu0 %318
    %320 = vrot.lane.b32.xlu0 %v271, 104
    %v321 = vpop.permute.xlu0 %320
    %322 = vrot.lane.b32.xlu0 %v274, 104
    %v323 = vpop.permute.xlu0 %322
    %328 = vst.msk [vmem:[#allocation3 + $0x60] sm:$0xff] %vm119, %v317
    %329 = vst.msk [vmem:[#allocation3 + $0x68] sm:$0xff] %vm119, %v319
    %330 = vst.msk [vmem:[#allocation3 + $0x70] sm:$0xff] %vm119, %v321
    %331 = vst.msk [vmem:[#allocation3 + $0x78] sm:$0xff] %vm119, %v323
    %v332 = vld [vmem:[#allocation9] sm:$0x7]
    %v333 = vld [vmem:[#allocation3] sm:$0xff]
    %v334 = vld [vmem:[#allocation3 + $0x8] sm:$0xff]
    %v335 = vld [vmem:[#allocation3 + $0x10] sm:$0xff]
    %v336 = vld [vmem:[#allocation3 + $0x18] sm:$0xff]
    %v337 = vld [vmem:[#allocation3 + $0x20] sm:$0xff]
    %v338 = vld [vmem:[#allocation3 + $0x28] sm:$0xff]
    %v339 = vld [vmem:[#allocation3 + $0x30] sm:$0xff]
    %v340 = vld [vmem:[#allocation3 + $0x38] sm:$0xff]
    %v341 = vld [vmem:[#allocation3 + $0x40] sm:$0xff]
    %v342 = vld [vmem:[#allocation3 + $0x48] sm:$0xff]
    %v343 = vld [vmem:[#allocation3 + $0x50] sm:$0xff]
    %v344 = vld [vmem:[#allocation3 + $0x58] sm:$0xff]
    %v345 = vld [vmem:[#allocation3 + $0x60] sm:$0xff]
    %v346 = vld [vmem:[#allocation3 + $0x68] sm:$0xff]
    %v347 = vld [vmem:[#allocation3 + $0x70] sm:$0xff]
    %v348 = vld [vmem:[#allocation3 + $0x78] sm:$0xff]
    %v349 = vperm.slane %v332, 0
    %v350 = vadd.f32 %v333, %v349
    %v351 = vadd.f32 %v334, %v349
    %v352 = vadd.f32 %v335, %v349
    %v353 = vadd.f32 %v336, %v349
    %v354 = vadd.f32 %v337, %v349
    %v355 = vadd.f32 %v338, %v349
    %v356 = vadd.f32 %v339, %v349
    %v357 = vadd.f32 %v340, %v349
    %v358 = vadd.f32 %v341, %v349
    %v359 = vadd.f32 %v342, %v349
    %v360 = vadd.f32 %v343, %v349
    %v361 = vadd.f32 %v344, %v349
    %v362 = vadd.f32 %v345, %v349
    %v363 = vadd.f32 %v346, %v349
    %v364 = vadd.f32 %v347, %v349
    %v365 = vadd.f32 %v348, %v349
    %v366 = vsel %vm119, %v350, 0.0
    %v367 = vsel %vm119, %v351, 0.0
    %v368 = vadd.f32 %v366, %v367
    %v369 = vsel %vm119, %v352, 0.0
    %v370 = vadd.f32 %v368, %v369
    %v371 = vsel %vm119, %v353, 0.0
    %v372 = vadd.f32 %v370, %v371
    %v373 = vsel %vm119, %v354, 0.0
    %v374 = vadd.f32 %v372, %v373
    %v375 = vsel %vm119, %v355, 0.0
    %v376 = vadd.f32 %v374, %v375
    %v377 = vsel %vm119, %v356, 0.0
    %v378 = vadd.f32 %v376, %v377
    %v379 = vsel %vm119, %v357, 0.0
    %v380 = vadd.f32 %v378, %v379
    %v381 = vsel %vm119, %v358, 0.0
    %v382 = vadd.f32 %v380, %v381
    %v383 = vsel %vm119, %v359, 0.0
    %v384 = vadd.f32 %v382, %v383
    %v385 = vsel %vm119, %v360, 0.0
    %v386 = vadd.f32 %v384, %v385
    %v387 = vsel %vm119, %v361, 0.0
    %v388 = vadd.f32 %v386, %v387
    %v389 = vsel %vm119, %v362, 0.0
    %v390 = vadd.f32 %v388, %v389
    %v391 = vsel %vm119, %v363, 0.0
    %v392 = vadd.f32 %v390, %v391
    %v393 = vsel %vm119, %v364, 0.0
    %v394 = vadd.f32 %v392, %v393
    %v395 = vsel %vm119, %v365, 0.0
    %v396 = vadd.f32 %v394, %v395
    %v397 = vrot.slane %v396, 4
    %v398 = vadd.f32 %v396, %v397
    %v399 = vrot.slane %v398, 2
    %v400 = vadd.f32 %v398, %v399
    %v401 = vrot.slane %v400, 1
    %v402 = vadd.f32 %v400, %v401
    %v403 = vmul.f32 %v402, 0.0078125
    %v404 = vsub.f32 %v350, %v403
    %v405 = vsub.f32 %v351, %v403
    %v406 = vsub.f32 %v352, %v403
    %v407 = vsub.f32 %v353, %v403
    %v408 = vsub.f32 %v354, %v403
    %v409 = vsub.f32 %v355, %v403
    %v410 = vsub.f32 %v356, %v403
    %v411 = vsub.f32 %v357, %v403
    %v412 = vsub.f32 %v358, %v403
    %v413 = vsub.f32 %v359, %v403
    %v414 = vsub.f32 %v360, %v403
    %v415 = vsub.f32 %v361, %v403
    %v416 = vsub.f32 %v362, %v403
    %v417 = vsub.f32 %v363, %v403
    %v418 = vsub.f32 %v364, %v403
    %v419 = vsub.f32 %v365, %v403
    %v420 = vmul.f32 %v404, %v404
    %v421 = vmul.f32 %v405, %v405
    %v422 = vmul.f32 %v406, %v406
    %v423 = vmul.f32 %v407, %v407
    %v424 = vmul.f32 %v408, %v408
    %v425 = vmul.f32 %v409, %v409
    %v426 = vmul.f32 %v410, %v410
    %v427 = vmul.f32 %v411, %v411
    %v428 = vmul.f32 %v412, %v412
    %v429 = vmul.f32 %v413, %v413
    %v430 = vmul.f32 %v414, %v414
    %v431 = vmul.f32 %v415, %v415
    %v432 = vmul.f32 %v416, %v416
    %v433 = vmul.f32 %v417, %v417
    %v434 = vmul.f32 %v418, %v418
    %v435 = vmul.f32 %v419, %v419
    %v436 = vsel %vm119, %v420, 0.0
    %v437 = vsel %vm119, %v421, 0.0
    %v438 = vadd.f32 %v436, %v437
    %v439 = vsel %vm119, %v422, 0.0
    %v440 = vadd.f32 %v438, %v439
    %v441 = vsel %vm119, %v423, 0.0
    %v442 = vadd.f32 %v440, %v441
    %v443 = vsel %vm119, %v424, 0.0
    %v444 = vadd.f32 %v442, %v443
    %v445 = vsel %vm119, %v425, 0.0
    %v446 = vadd.f32 %v444, %v445
    %v447 = vsel %vm119, %v426, 0.0
    %v448 = vadd.f32 %v446, %v447
    %v449 = vsel %vm119, %v427, 0.0
    %v450 = vadd.f32 %v448, %v449
    %v451 = vsel %vm119, %v428, 0.0
    %v452 = vadd.f32 %v450, %v451
    %v453 = vsel %vm119, %v429, 0.0
    %v454 = vadd.f32 %v452, %v453
    %v455 = vsel %vm119, %v430, 0.0
    %v456 = vadd.f32 %v454, %v455
    %v457 = vsel %vm119, %v431, 0.0
    %v458 = vadd.f32 %v456, %v457
    %v459 = vsel %vm119, %v432, 0.0
    %v460 = vadd.f32 %v458, %v459
    %v461 = vsel %vm119, %v433, 0.0
    %v462 = vadd.f32 %v460, %v461
    %v463 = vsel %vm119, %v434, 0.0
    %v464 = vadd.f32 %v462, %v463
    %v465 = vsel %vm119, %v435, 0.0
    %v466 = vadd.f32 %v464, %v465
    %v467 = vrot.slane %v466, 4
    %v468 = vadd.f32 %v466, %v467
    %v469 = vrot.slane %v468, 2
    %v470 = vadd.f32 %v468, %v469
    %v471 = vrot.slane %v470, 1
    %v472 = vadd.f32 %v470, %v471
    %v473 = vmul.f32 %v472, 0.0078125
    %v474 = vadd.f32 %v473, 1e-05
    %v475 = vrsqrt.pop %v474
    %v476 = vmul.f32 %v475, %v474
    %v477 = vmul.f32 %v476, %v475
    %v478 = vmul.f32 0.5, %v477
    %v479 = vsub.f32 1.5, %v478
    %v480 = vmul.f32 %v475, %v479
    %vm481 = vweird.f32 %v474
    %vm482 = vweird.f32 %v475
    %vm483 = vmor %vm481, %vm482
    %v484 = vsel %vm483, %v475, %v480
    %v485 = vmul.f32 %v404, %v484
    %v486 = vmul.f32 %v405, %v484
    %v487 = vmul.f32 %v406, %v484
    %v488 = vmul.f32 %v407, %v484
    %v489 = vmul.f32 %v408, %v484
    %v490 = vmul.f32 %v409, %v484
    %v491 = vmul.f32 %v410, %v484
    %v492 = vmul.f32 %v411, %v484
    %v493 = vmul.f32 %v412, %v484
    %v494 = vmul.f32 %v413, %v484
    %v495 = vmul.f32 %v414, %v484
    %v496 = vmul.f32 %v415, %v484
    %v497 = vmul.f32 %v416, %v484
    %v498 = vmul.f32 %v417, %v484
    %v499 = vmul.f32 %v418, %v484
    %v500 = vmul.f32 %v419, %v484
    %v501 = vperm.slane %v332, 1
    %v502 = vmul.f32 %v485, %v501
    %v503 = vmul.f32 %v486, %v501
    %v504 = vmul.f32 %v487, %v501
    %v505 = vmul.f32 %v488, %v501
    %v506 = vmul.f32 %v489, %v501
    %v507 = vmul.f32 %v490, %v501
    %v508 = vmul.f32 %v491, %v501
    %v509 = vmul.f32 %v492, %v501
    %v510 = vmul.f32 %v493, %v501
    %v511 = vmul.f32 %v494, %v501
    %v512 = vmul.f32 %v495, %v501
    %v513 = vmul.f32 %v496, %v501
    %v514 = vmul.f32 %v497, %v501
    %v515 = vmul.f32 %v498, %v501
    %v516 = vmul.f32 %v499, %v501
    %v517 = vmul.f32 %v500, %v501
    %v518 = vperm.slane %v332, 2
    %v519 = vadd.f32 %v502, %v518
    %v520 = vadd.f32 %v503, %v518
    %v521 = vadd.f32 %v504, %v518
    %v522 = vadd.f32 %v505, %v518
    %v523 = vadd.f32 %v506, %v518
    %v524 = vadd.f32 %v507, %v518
    %v525 = vadd.f32 %v508, %v518
    %v526 = vadd.f32 %v509, %v518
    %v527 = vadd.f32 %v510, %v518
    %v528 = vadd.f32 %v511, %v518
    %v529 = vadd.f32 %v512, %v518
    %v530 = vadd.f32 %v513, %v518
    %v531 = vadd.f32 %v514, %v518
    %v532 = vadd.f32 %v515, %v518
    %v533 = vadd.f32 %v516, %v518
    %v534 = vadd.f32 %v517, %v518
    %v535 = vmul.f32 %v519, 0.2
    %v536 = vmul.f32 %v520, 0.2
    %v537 = vmul.f32 %v521, 0.2
    %v538 = vmul.f32 %v522, 0.2
    %v539 = vmul.f32 %v523, 0.2
    %v540 = vmul.f32 %v524, 0.2
    %v541 = vmul.f32 %v525, 0.2
    %v542 = vmul.f32 %v526, 0.2
    %v543 = vmul.f32 %v527, 0.2
    %v544 = vmul.f32 %v528, 0.2
    %v545 = vmul.f32 %v529, 0.2
    %v546 = vmul.f32 %v530, 0.2
    %v547 = vmul.f32 %v531, 0.2
    %v548 = vmul.f32 %v532, 0.2
    %v549 = vmul.f32 %v533, 0.2
    %v550 = vmul.f32 %v534, 0.2
    %v551 = vmax.f32 %v519, %v535
    %v552 = vmax.f32 %v520, %v536
    %v553 = vmax.f32 %v521, %v537
    %v554 = vmax.f32 %v522, %v538
    %v555 = vmax.f32 %v523, %v539
    %v556 = vmax.f32 %v524, %v540
    %v557 = vmax.f32 %v525, %v541
    %v558 = vmax.f32 %v526, %v542
    %v559 = vmax.f32 %v527, %v543
    %v560 = vmax.f32 %v528, %v544
    %v561 = vmax.f32 %v529, %v545
    %v562 = vmax.f32 %v530, %v546
    %v563 = vmax.f32 %v531, %v547
    %v564 = vmax.f32 %v532, %v548
    %v565 = vmax.f32 %v533, %v549
    %v566 = vmax.f32 %v534, %v550
    %v567 = vld [vmem:[#allocation11] sm:$0xff]
    %v568 = vld [vmem:[#allocation12] sm:$0x7]
    %v569 = vperm.slane %v568, 0
    %v571 = vsel %vm119, %v551, 0
    %v574 = vsel %vm119, %v552, 0
    %v577 = vsel %vm119, %v553, 0
    %v580 = vsel %vm119, %v554, 0
    %v583 = vsel %vm119, %v555, 0
    %v586 = vsel %vm119, %v556, 0
    %v589 = vsel %vm119, %v557, 0
    %v592 = vsel %vm119, %v558, 0
    %v595 = vsel %vm119, %v559, 0
    %v598 = vsel %vm119, %v560, 0
    %v601 = vsel %vm119, %v561, 0
    %v604 = vsel %vm119, %v562, 0
    %v607 = vsel %vm119, %v563, 0
    %v610 = vsel %vm119, %v564, 0
    %v613 = vsel %vm119, %v565, 0
    %v616 = vsel %vm119, %v566, 0
    %618 = vmatpush.msra.mxu0 0.0
    %619 = vmatpush.msra.mxu0 0.0
    %620 = vmatpush.msra.mxu0 0.0
    %621 = vmatpush.msra.mxu0 0.0
    %622 = vmatpush.msra.mxu0 0.0
    %623 = vmatpush.msra.mxu0 0.0
    %624 = vmatpush.msra.mxu0 0.0
    %625 = vmatpush.msra.mxu0 0.0
    %626 = vmatpush.msra.mxu0 0.0
    %627 = vmatpush.msra.mxu0 0.0
    %628 = vmatpush.msra.mxu0 0.0
    %629 = vmatpush.msra.mxu0 0.0
    %630 = vmatpush.msra.mxu0 0.0
    %631 = vmatpush.msra.mxu0 0.0
    %632 = vmatpush.msra.mxu0 0.0
    %633 = vmatpush.msra.mxu0 %v567
    %634 = vmatmul.f32.gmra.mxu0 %v571
    %v635 = vpop.f32.mrf.mxu0
    %v636 = vadd.f32 %v569, %v635
    %637 = vmatmul.f32.gmra.mxu0 %v574
    %v638 = vpop.f32.mrf.mxu0
    %v639 = vadd.f32 %v569, %v638
    %640 = vmatmul.f32.gmra.mxu0 %v577
    %v641 = vpop.f32.mrf.mxu0
    %v642 = vadd.f32 %v569, %v641
    %643 = vmatmul.f32.gmra.mxu0 %v580
    %v644 = vpop.f32.mrf.mxu0
    %v645 = vadd.f32 %v569, %v644
    %646 = vmatmul.f32.gmra.mxu0 %v583
    %v647 = vpop.f32.mrf.mxu0
    %v648 = vadd.f32 %v569, %v647
    %649 = vmatmul.f32.gmra.mxu0 %v586
    %v650 = vpop.f32.mrf.mxu0
    %v651 = vadd.f32 %v569, %v650
    %652 = vmatmul.f32.gmra.mxu0 %v589
    %v653 = vpop.f32.mrf.mxu0
    %v654 = vadd.f32 %v569, %v653
    %655 = vmatmul.f32.gmra.mxu0 %v592
    %v656 = vpop.f32.mrf.mxu0
    %v657 = vadd.f32 %v569, %v656
    %658 = vmatmul.f32.gmra.mxu0 %v595
    %v659 = vpop.f32.mrf.mxu0
    %v660 = vadd.f32 %v569, %v659
    %661 = vmatmul.f32.gmra.mxu0 %v598
    %v662 = vpop.f32.mrf.mxu0
    %v663 = vadd.f32 %v569, %v662
    %664 = vmatmul.f32.gmra.mxu0 %v601
    %v665 = vpop.f32.mrf.mxu0
    %v666 = vadd.f32 %v569, %v665
    %667 = vmatmul.f32.gmra.mxu0 %v604
    %v668 = vpop.f32.mrf.mxu0
    %v669 = vadd.f32 %v569, %v668
    %670 = vmatmul.f32.gmra.mxu0 %v607
    %v671 = vpop.f32.mrf.mxu0
    %v672 = vadd.f32 %v569, %v671
    %673 = vmatmul.f32.gmra.mxu0 %v610
    %v674 = vpop.f32.mrf.mxu0
    %v675 = vadd.f32 %v569, %v674
    %676 = vmatmul.f32.gmra.mxu0 %v613
    %v677 = vpop.f32.mrf.mxu0
    %v678 = vadd.f32 %v569, %v677
    %679 = vmatmul.f32.gmra.mxu0 %v616
    %v680 = vpop.f32.mrf.mxu0
    %v681 = vadd.f32 %v569, %v680
    %682 = vdwg.mxu0
    %v683 = vsel %vm234, %v636, 0.0
    %v684 = vsel %vm234, %v639, 0.0
    %v685 = vadd.f32 %v683, %v684
    %v686 = vsel %vm234, %v642, 0.0
    %v687 = vadd.f32 %v685, %v686
    %v688 = vsel %vm234, %v645, 0.0
    %v689 = vadd.f32 %v687, %v688
    %v690 = vsel %vm234, %v648, 0.0
    %v691 = vadd.f32 %v689, %v690
    %v692 = vsel %vm234, %v651, 0.0
    %v693 = vadd.f32 %v691, %v692
    %v694 = vsel %vm234, %v654, 0.0
    %v695 = vadd.f32 %v693, %v694
    %v696 = vsel %vm234, %v657, 0.0
    %v697 = vadd.f32 %v695, %v696
    %v698 = vsel %vm234, %v660, 0.0
    %v699 = vadd.f32 %v697, %v698
    %v700 = vsel %vm234, %v663, 0.0
    %v701 = vadd.f32 %v699, %v700
    %v702 = vsel %vm234, %v666, 0.0
    %v703 = vadd.f32 %v701, %v702
    %v704 = vsel %vm234, %v669, 0.0
    %v705 = vadd.f32 %v703, %v704
    %v706 = vsel %vm234, %v672, 0.0
    %v707 = vadd.f32 %v705, %v706
    %v708 = vsel %vm234, %v675, 0.0
    %v709 = vadd.f32 %v707, %v708
    %v710 = vsel %vm234, %v678, 0.0
    %v711 = vadd.f32 %v709, %v710
    %v712 = vsel %vm234, %v681, 0.0
    %v713 = vadd.f32 %v711, %v712
    %v714 = vrot.slane %v713, 4
    %v715 = vadd.f32 %v713, %v714
    %v716 = vrot.slane %v715, 2
    %v717 = vadd.f32 %v715, %v716
    %v718 = vrot.slane %v717, 1
    %v719 = vadd.f32 %v717, %v718
    %721 = vrot.lane.b32.xlu0 %v719, 124
    %v722 = vpop.permute.xlu0 %721
    %v724 = vadd.f32 %v719, %v722
    %725 = vrot.lane.b32.xlu0 %v719, 120
    %v726 = vpop.permute.xlu0 %725
    %v728 = vadd.f32 %v724, %v726
    %729 = vrot.lane.b32.xlu0 %v719, 116
    %v730 = vpop.permute.xlu0 %729
    %v732 = vadd.f32 %v728, %v730
    %734 = vrot.lane.b32.xlu0 %v732, 4
    %v735 = vpop.permute.xlu0 %734
    %737 = vrot.lane.b32.xlu0 %v732, 8
    %v738 = vpop.permute.xlu0 %737
    %740 = vrot.lane.b32.xlu0 %v732, 12
    %v741 = vpop.permute.xlu0 %740
    %vm743 = vcmask 31744
    %v744 = vsel %vm743, %v732, %v735
    %v745 = vsel %vm119, %v744, %v738
    %vm746 = vcmask 97280
    %v747 = vsel %vm746, %v745, %v741
    %v748 = vmul.f32 %v747, 0.001953125
    %v749 = vperm.slane %v748, 0
    %v750 = vsub.f32 %v636, %v749
    %v751 = vsub.f32 %v639, %v749
    %v752 = vsub.f32 %v642, %v749
    %v753 = vsub.f32 %v645, %v749
    %v754 = vsub.f32 %v648, %v749
    %v755 = vsub.f32 %v651, %v749
    %v756 = vsub.f32 %v654, %v749
    %v757 = vsub.f32 %v657, %v749
    %v758 = vsub.f32 %v660, %v749
    %v759 = vsub.f32 %v663, %v749
    %v760 = vsub.f32 %v666, %v749
    %v761 = vsub.f32 %v669, %v749
    %v762 = vsub.f32 %v672, %v749
    %v763 = vsub.f32 %v675, %v749
    %v764 = vsub.f32 %v678, %v749
    %v765 = vsub.f32 %v681, %v749
    %v766 = vmul.f32 %v750, %v750
    %v767 = vmul.f32 %v751, %v751
    %v768 = vmul.f32 %v752, %v752
    %v769 = vmul.f32 %v753, %v753
    %v770 = vmul.f32 %v754, %v754
    %v771 = vmul.f32 %v755, %v755
    %v772 = vmul.f32 %v756, %v756
    %v773 = vmul.f32 %v757, %v757
    %v774 = vmul.f32 %v758, %v758
    %v775 = vmul.f32 %v759, %v759
    %v776 = vmul.f32 %v760, %v760
    %v777 = vmul.f32 %v761, %v761
    %v778 = vmul.f32 %v762, %v762
    %v779 = vmul.f32 %v763, %v763
    %v780 = vmul.f32 %v764, %v764
    %v781 = vmul.f32 %v765, %v765
    %v782 = vsel %vm234, %v766, 0.0
    %v783 = vsel %vm234, %v767, 0.0
    %v784 = vadd.f32 %v782, %v783
    %v785 = vsel %vm234, %v768, 0.0
    %v786 = vadd.f32 %v784, %v785
    %v787 = vsel %vm234, %v769, 0.0
    %v788 = vadd.f32 %v786, %v787
    %v789 = vsel %vm234, %v770, 0.0
    %v790 = vadd.f32 %v788, %v789
    %v791 = vsel %vm234, %v771, 0.0
    %v792 = vadd.f32 %v790, %v791
    %v793 = vsel %vm234, %v772, 0.0
    %v794 = vadd.f32 %v792, %v793
    %v795 = vsel %vm234, %v773, 0.0
    %v796 = vadd.f32 %v794, %v795
    %v797 = vsel %vm234, %v774, 0.0
    %v798 = vadd.f32 %v796, %v797
    %v799 = vsel %vm234, %v775, 0.0
    %v800 = vadd.f32 %v798, %v799
    %v801 = vsel %vm234, %v776, 0.0
    %v802 = vadd.f32 %v800, %v801
    %v803 = vsel %vm234, %v777, 0.0
    %v804 = vadd.f32 %v802, %v803
    %v805 = vsel %vm234, %v778, 0.0
    %v806 = vadd.f32 %v804, %v805
    %v807 = vsel %vm234, %v779, 0.0
    %v808 = vadd.f32 %v806, %v807
    %v809 = vsel %vm234, %v780, 0.0
    %v810 = vadd.f32 %v808, %v809
    %v811 = vsel %vm234, %v781, 0.0
    %v812 = vadd.f32 %v810, %v811
    %v813 = vrot.slane %v812, 4
    %v814 = vadd.f32 %v812, %v813
    %v815 = vrot.slane %v814, 2
    %v816 = vadd.f32 %v814, %v815
    %v817 = vrot.slane %v816, 1
    %v818 = vadd.f32 %v816, %v817
    %820 = vrot.lane.b32.xlu0 %v818, 124
    %v821 = vpop.permute.xlu0 %820
    %v823 = vadd.f32 %v818, %v821
    %824 = vrot.lane.b32.xlu0 %v818, 120
    %v825 = vpop.permute.xlu0 %824
    %v827 = vadd.f32 %v823, %v825
    %828 = vrot.lane.b32.xlu0 %v818, 116
    %v829 = vpop.permute.xlu0 %828
    %v831 = vadd.f32 %v827, %v829
    %833 = vrot.lane.b32.xlu0 %v831, 4
    %v834 = vpop.permute.xlu0 %833
    %836 = vrot.lane.b32.xlu0 %v831, 8
    %v837 = vpop.permute.xlu0 %836
    %839 = vrot.lane.b32.xlu0 %v831, 12
    %v840 = vpop.permute.xlu0 %839
    %v842 = vsel %vm743, %v831, %v834
    %v843 = vsel %vm119, %v842, %v837
    %v844 = vsel %vm746, %v843, %v840
    %v845 = vmul.f32 %v844, 0.001953125
    %v846 = vadd.f32 %v845, 1e-05
    %v847 = vrsqrt.pop %v846
    %v848 = vmul.f32 %v847, %v846
    %v849 = vmul.f32 %v848, %v847
    %v850 = vmul.f32 0.5, %v849
    %v851 = vsub.f32 1.5, %v850
    %v852 = vmul.f32 %v847, %v851
    %vm853 = vweird.f32 %v846
    %vm854 = vweird.f32 %v847
    %vm855 = vmor %vm853, %vm854
    %v856 = vsel %vm855, %v847, %v852
    %v857 = vperm.slane %v856, 0
    %v858 = vmul.f32 %v750, %v857
    %v859 = vmul.f32 %v751, %v857
    %v860 = vmul.f32 %v752, %v857
    %v861 = vmul.f32 %v753, %v857
    %v862 = vmul.f32 %v754, %v857
    %v863 = vmul.f32 %v755, %v857
    %v864 = vmul.f32 %v756, %v857
    %v865 = vmul.f32 %v757, %v857
    %v866 = vmul.f32 %v758, %v857
    %v867 = vmul.f32 %v759, %v857
    %v868 = vmul.f32 %v760, %v857
    %v869 = vmul.f32 %v761, %v857
    %v870 = vmul.f32 %v762, %v857
    %v871 = vmul.f32 %v763, %v857
    %v872 = vmul.f32 %v764, %v857
    %v873 = vmul.f32 %v765, %v857
    %v874 = vperm.slane %v568, 1
    %v875 = vmul.f32 %v858, %v874
    %v876 = vmul.f32 %v859, %v874
    %v877 = vmul.f32 %v860, %v874
    %v878 = vmul.f32 %v861, %v874
    %v879 = vmul.f32 %v862, %v874
    %v880 = vmul.f32 %v863, %v874
    %v881 = vmul.f32 %v864, %v874
    %v882 = vmul.f32 %v865, %v874
    %v883 = vmul.f32 %v866, %v874
    %v884 = vmul.f32 %v867, %v874
    %v885 = vmul.f32 %v868, %v874
    %v886 = vmul.f32 %v869, %v874
    %v887 = vmul.f32 %v870, %v874
    %v888 = vmul.f32 %v871, %v874
    %v889 = vmul.f32 %v872, %v874
    %v890 = vmul.f32 %v873, %v874
    %v891 = vperm.slane %v568, 2
    %v892 = vadd.f32 %v875, %v891
    %v893 = vadd.f32 %v876, %v891
    %v894 = vadd.f32 %v877, %v891
    %v895 = vadd.f32 %v878, %v891
    %v896 = vadd.f32 %v879, %v891
    %v897 = vadd.f32 %v880, %v891
    %v898 = vadd.f32 %v881, %v891
    %v899 = vadd.f32 %v882, %v891
    %v900 = vadd.f32 %v883, %v891
    %v901 = vadd.f32 %v884, %v891
    %v902 = vadd.f32 %v885, %v891
    %v903 = vadd.f32 %v886, %v891
    %v904 = vadd.f32 %v887, %v891
    %v905 = vadd.f32 %v888, %v891
    %v906 = vadd.f32 %v889, %v891
    %v907 = vadd.f32 %v890, %v891
    %v908 = vmul.f32 %v892, 0.2
    %v909 = vmul.f32 %v893, 0.2
    %v910 = vmul.f32 %v894, 0.2
    %v911 = vmul.f32 %v895, 0.2
    %v912 = vmul.f32 %v896, 0.2
    %v913 = vmul.f32 %v897, 0.2
    %v914 = vmul.f32 %v898, 0.2
    %v915 = vmul.f32 %v899, 0.2
    %v916 = vmul.f32 %v900, 0.2
    %v917 = vmul.f32 %v901, 0.2
    %v918 = vmul.f32 %v902, 0.2
    %v919 = vmul.f32 %v903, 0.2
    %v920 = vmul.f32 %v904, 0.2
    %v921 = vmul.f32 %v905, 0.2
    %v922 = vmul.f32 %v906, 0.2
    %v923 = vmul.f32 %v907, 0.2
    %v924 = vmax.f32 %v892, %v908
    %v925 = vmax.f32 %v893, %v909
    %v926 = vmax.f32 %v894, %v910
    %v927 = vmax.f32 %v895, %v911
    %v928 = vmax.f32 %v896, %v912
    %v929 = vmax.f32 %v897, %v913
    %v930 = vmax.f32 %v898, %v914
    %v931 = vmax.f32 %v899, %v915
    %v932 = vmax.f32 %v900, %v916
    %v933 = vmax.f32 %v901, %v917
    %v934 = vmax.f32 %v902, %v918
    %v935 = vmax.f32 %v903, %v919
    %v936 = vmax.f32 %v904, %v920
    %v937 = vmax.f32 %v905, %v921
    %v938 = vmax.f32 %v906, %v922
    %v939 = vmax.f32 %v907, %v923
    %v940 = vpack.c.bf16 %v924, %v924
    %v941 = vpack.c.bf16 %v925, %v925
    %v942 = vpack.c.bf16 %v926, %v926
    %v943 = vpack.c.bf16 %v927, %v927
    %v944 = vpack.c.bf16 %v928, %v928
    %v945 = vpack.c.bf16 %v929, %v929
    %v946 = vpack.c.bf16 %v930, %v930
    %v947 = vpack.c.bf16 %v931, %v931
    %v948 = vpack.c.bf16 %v932, %v932
    %v949 = vpack.c.bf16 %v933, %v933
    %v950 = vpack.c.bf16 %v934, %v934
    %v951 = vpack.c.bf16 %v935, %v935
    %v952 = vpack.c.bf16 %v936, %v936
    %v953 = vpack.c.bf16 %v937, %v937
    %v954 = vpack.c.bf16 %v938, %v938
    %v955 = vpack.c.bf16 %v939, %v939
    %vm956 = vcmask 125952
    %957 = vst.msk [vmem:[%s7] sm:$0xf] %vm956, %v940
    %958 = vst.msk [vmem:[%s7 + $0x4] sm:$0xf] %vm956, %v941
    %959 = vst.msk [vmem:[%s7 + $0x8] sm:$0xf] %vm956, %v942
    %960 = vst.msk [vmem:[%s7 + $0xc] sm:$0xf] %vm956, %v943
    %961 = vst.msk [vmem:[%s7 + $0x10] sm:$0xf] %vm956, %v944
    %962 = vst.msk [vmem:[%s7 + $0x14] sm:$0xf] %vm956, %v945
    %963 = vst.msk [vmem:[%s7 + $0x18] sm:$0xf] %vm956, %v946
    %964 = vst.msk [vmem:[%s7 + $0x1c] sm:$0xf] %vm956, %v947
    %965 = vst.msk [vmem:[%s7 + $0x20] sm:$0xf] %vm956, %v948
    %966 = vst.msk [vmem:[%s7 + $0x24] sm:$0xf] %vm956, %v949
    %967 = vst.msk [vmem:[%s7 + $0x28] sm:$0xf] %vm956, %v950
    %968 = vst.msk [vmem:[%s7 + $0x2c] sm:$0xf] %vm956, %v951
    %969 = vst.msk [vmem:[%s7 + $0x30] sm:$0xf] %vm956, %v952
    %970 = vst.msk [vmem:[%s7 + $0x34] sm:$0xf] %vm956, %v953
    %971 = vst.msk [vmem:[%s7 + $0x38] sm:$0xf] %vm956, %v954
    %972 = vst.msk [vmem:[%s7 + $0x3c] sm:$0xf] %vm956, %v955
    // Predicated region
    $region54: #{decoder_forward.2} parent=1 // pred_check
      _
    $region55: #{decoder_forward.2} parent=1 // pred_check_branch
      %974 = sbr.rel (0) target = $region57
    $region56: #{decoder_forward.2} parent=1 // pred_region
      _
    $region57: #{decoder_forward.2} parent=1 // pred_fallthru
      _
    // Predicated region
    $region58: #{decoder_forward.2} parent=1 // pred_check
      _
    $region59: #{decoder_forward.2} parent=1 // pred_check_branch
      %976 = sbr.rel (0) target = $region61
    $region60: #{decoder_forward.2} parent=1 // pred_region
      _
    $region61: #{decoder_forward.2} parent=1 // pred_fallthru
      _
    %977 = vsyncpa [#allocation5], 1
    %978 = vsyncpa [#allocation7], 1
    %979 = vsyncpa [#allocation10], 1
    %980 = vsyncpa [#allocation13], 1

// kernel: decoder_forward.3
$region0: #{decoder_forward.3}
  #allocation0 [shape = 'u32[]', space=smem, size = 0x4, offset = 0x4, fixed_abs, tag = 'smem constant byte address 0x4 - core index']
  #allocation1 [shape = 'u32[72,128]{1,0:T(1,128)}', space=vmem, size = 0x9000, scoped, tag = 'internal scratch']
  %s0 = inlined_call_operand.vmem [shape: bf16[2,3,16,128], index: 0, kind: input, shape index: {}]
  %s1 = inlined_call_operand.vmem [shape: bf16[3,128,128], index: 1, kind: input, shape index: {}]
  %s2 = inlined_call_operand.vmem [shape: f32[1,128], index: 2, kind: input, shape index: {}]
  %s3 = inlined_call_operand.vmem [shape: f32[2,16,128], index: 3, kind: output, shape index: {}]
  %s4 = sld [smem:[#allocation0]]
  $region45: #{decoder_forward.3} parent=0
    _
  %s6 = ssub.s32 1, %s4
  %s7 = scalar_select 0, %s6, %s4
  loop: start=0, step=1, limit=4
  $region2: #{decoder_forward.3} parent=0 // loop_pre_header
    _
  $region3: #{decoder_forward.3} parent=0 // loop_header
    %s9 = sphi 0, %s13
    %p10 = scmp.ge.s32.totalorder %s9, 4
    %s19 = sphi 0, %s21
    %s22 = sphi 0, %s19
    %s23 = sphi 0, %s22
    %s39 = sphi 0, %s23
    %s43 = sphi 0, %s43
    %s45 = sphi 0, %s43
    %s46 = sphi 0, %s45
    %s60 = sphi 0, %s46
    %s64 = sphi 0, %s64
    %s66 = sphi 0, %s64
    %s67 = sphi 0, %s66
    %s81 = sphi 0, %s67
    %s87 = sphi 0, %s89
    %s90 = sphi 0, %s87
    %s91 = sphi 0, %s90
    %s107 = sphi 0, %s91
  $region4: #{decoder_forward.3} parent=0 // loop_header_branch
    %12 = sbr.rel (%p10) target = $region8
  $region5: #{decoder_forward.3} parent=0 // loop_body
    %s14 = ssub.s32 %s9, 1
    %s15 = ssub.s32 %s9, 2
    %s16 = sadd.s32 %s9, 1
    %s17 = ssub.s32 %s9, %s16
    %p18 = scmp.eq.s32.totalorder %s17, 0
    %s20 = sadd.s32 %s19, 1
    %s21 = scalar_select %p18, %s19, %s20
    %p24 = pneg %p18
    %p25 = scmp.eq.s32.totalorder %s9, 1
    %p26 = por %p24, %p25
    %p27 = scmp.ne.s32.totalorder %s19, %s22
    %p28 = scmp.eq.s32.totalorder %s9, 0
    %p29 = por %p27, %p28
    %p30 = scmp.ne.s32.totalorder %s19, %s22
    %p31 = scmp.eq.s32.totalorder %s14, 1
    %p32 = por %p30, %p31
    %p33 = scmp.ne.s32.totalorder %s22, %s23
    %p34 = scmp.eq.s32.totalorder %s14, 0
    %p35 = por %p33, %p34
    %p36 = scmp.ne.s32.totalorder %s22, %s23
    %p37 = scmp.eq.s32.totalorder %s15, 1
    %p38 = por %p36, %p37
    %p40 = scmp.ne.s32.totalorder %s23, %s39
    %p41 = scmp.eq.s32.totalorder %s15, 0
    %p42 = por %p40, %p41
    %s44 = sadd.s32 %s43, 1
    %p47 = scmp.eq.s32.totalorder %s9, 1
    %p48 = scmp.ne.s32.totalorder %s43, %s45
    %p49 = scmp.eq.s32.totalorder %s9, 0
    %p50 = por %p48, %p49
    %p51 = scmp.ne.s32.totalorder %s43, %s45
    %p52 = scmp.eq.s32.totalorder %s14, 1
    %p53 = por %p51, %p52
    %p54 = scmp.ne.s32.totalorder %s45, %s46
    %p55 = scmp.eq.s32.totalorder %s14, 0
    %p56 = por %p54, %p55
    %p57 = scmp.ne.s32.totalorder %s45, %s46
    %p58 = scmp.eq.s32.totalorder %s15, 1
    %p59 = por %p57, %p58
    %p61 = scmp.ne.s32.totalorder %s46, %s60
    %p62 = scmp.eq.s32.totalorder %s15, 0
    %p63 = por %p61, %p62
    %s65 = sadd.s32 %s64, 1
    %p68 = scmp.eq.s32.totalorder %s9, 1
    %p69 = scmp.ne.s32.totalorder %s64, %s66
    %p70 = scmp.eq.s32.totalorder %s9, 0
    %p71 = por %p69, %p70
    %p72 = scmp.ne.s32.totalorder %s64, %s66
    %p73 = scmp.eq.s32.totalorder %s14, 1
    %p74 = por %p72, %p73
    %p75 = scmp.ne.s32.totalorder %s66, %s67
    %p76 = scmp.eq.s32.totalorder %s14, 0
    %p77 = por %p75, %p76
    %p78 = scmp.ne.s32.totalorder %s66, %s67
    %p79 = scmp.eq.s32.totalorder %s15, 1
    %p80 = por %p78, %p79
    %p82 = scmp.ne.s32.totalorder %s67, %s81
    %p83 = scmp.eq.s32.totalorder %s15, 0
    %p84 = por %p82, %p83
    %s85 = ssub.s32 %s9, %s16
    %p86 = scmp.eq.s32.totalorder %s85, 0
    %s88 = sadd.s32 %s87, 1
    %s89 = scalar_select %p86, %s87, %s88
    %p92 = pneg %p86
    %p93 = scmp.eq.s32.totalorder %s9, 1
    %p94 = por %p92, %p93
    %p95 = scmp.ne.s32.totalorder %s87, %s90
    %p96 = scmp.eq.s32.totalorder %s9, 0
    %p97 = por %p95, %p96
    %p98 = scmp.ne.s32.totalorder %s87, %s90
    %p99 = scmp.eq.s32.totalorder %s14, 1
    %p100 = por %p98, %p99
    %p101 = scmp.ne.s32.totalorder %s90, %s91
    %p102 = scmp.eq.s32.totalorder %s14, 0
    %p103 = por %p101, %p102
    %p104 = scmp.ne.s32.totalorder %s90, %s91
    %p105 = scmp.eq.s32.totalorder %s15, 1
    %p106 = por %p104, %p105
    %p108 = scmp.ne.s32.totalorder %s91, %s107
    %p109 = scmp.eq.s32.totalorder %s15, 0
    %p110 = por %p108, %p109
    %p111 = scmp.le.s32.totalorder 1, %s9
    %p112 = scmp.lt.s32.totalorder %s9, 3
    %p113 = pnand %p111, %p112
    %p114 = pneg %p113
    // Predicated region
    $region9: #{decoder_forward.3} parent=5 // pred_check
      _
    $region10: #{decoder_forward.3} parent=5 // pred_check_branch
      %116 = sbr.rel (%p113) target = $region12
    $region11: #{decoder_forward.3} parent=5 // pred_region
      %s117 = ssub.s32 %s9, 1
      // Predicated region
      $region13: #{decoder_forward.3} parent=11 // pred_check
        %p118 = pneg %p56
      $region14: #{decoder_forward.3} parent=11 // pred_check_branch
        %120 = sbr.rel (%p118) target = $region16
      $region15: #{decoder_forward.3} parent=11 // pred_region
        _
      $region16: #{decoder_forward.3} parent=11 // pred_fallthru
        _
      // Predicated region
      $region17: #{decoder_forward.3} parent=11 // pred_check
        %p121 = pneg %p77
      $region18: #{decoder_forward.3} parent=11 // pred_check_branch
        %123 = sbr.rel (%p121) target = $region20
      $region19: #{decoder_forward.3} parent=11 // pred_region
        _
      $region20: #{decoder_forward.3} parent=11 // pred_fallthru
        _
    $region12: #{decoder_forward.3} parent=5 // pred_fallthru
      _
    %p124 = scmp.lt.s32.totalorder %s9, 2
    // Predicated region
    $region21: #{decoder_forward.3} parent=5 // pred_check
      %p125 = pneg %p124
    $region22: #{decoder_forward.3} parent=5 // pred_check_branch
      %127 = sbr.rel (%p125) target = $region24
    $region23: #{decoder_forward.3} parent=5 // pred_region
      // Predicated region
      $region25: #{decoder_forward.3} parent=23 // pred_check
        %p128 = pneg %p29
      $region26: #{decoder_forward.3} parent=23 // pred_check_branch
        %130 = sbr.rel (%p128) target = $region28
      $region27: #{decoder_forward.3} parent=23 // pred_region
        %p131 = scmp.lt.s32.totalorder %s9, 1
        %s132 = scalar_select %p131, %s9, 1
        %s133 = smul.addr %s132, 6
        %s134 = smul.addr %s133, 4
        %s135 = scalar_lea.vmem %s0, %s134
      $region28: #{decoder_forward.3} parent=23 // pred_fallthru
        _
    $region24: #{decoder_forward.3} parent=5 // pred_fallthru
      _
    %p136 = scmp.le.s32.totalorder 1, %s9
    %p137 = scmp.lt.s32.totalorder %s9, 3
    %p138 = pnand %p136, %p137
    %p139 = pneg %p138
    // Predicated region
    $region29: #{decoder_forward.3} parent=5 // pred_check
      _
    $region30: #{decoder_forward.3} parent=5 // pred_check_branch
      %141 = sbr.rel (%p138) target = $region32
    $region31: #{decoder_forward.3} parent=5 // pred_region
      %s142 = ssub.s32 %s9, 1
      %p143 = scmp.lt.s32.totalorder %s14, 1
      %s144 = scalar_select %p143, %s14, 1
      %s145 = smul.addr %s144, 6
      %s146 = smul.addr %s145, 4
      %s147 = scalar_lea.vmem %s0, %s146
      %p148 = pneg %p35
      %p149 = pneg %p32
      %p150 = pneg %p56
      %p151 = pneg %p53
      %p152 = pneg %p77
      %p153 = pneg %p74
      %p154 = pneg %p103
      %p155 = pneg %p100
      %p156 = scmp.lt.s32.totalorder %s14, 1
      %s157 = scalar_select %p156, %s14, 1
      %s158 = smul.addr %s157, 2
      %s159 = smul.addr %s158, 8
      %s160 = scalar_lea.vmem %s3, %s159
      %p161 = scmp.lt.s32.totalorder %s14, 1
      %s162 = scalar_select %p161, %s14, 1
      %s163 = smul.addr %s162, 6
      %s164 = smul.addr %s163, 4
      %s165 = scalar_lea.vmem %s0, %s164
      %p166 = scmp.lt.s32.totalorder %s14, 1
      %s167 = scalar_select %p166, %s14, 1
      %s168 = smul.addr %s167, 2
      %s169 = smul.addr %s168, 8
      %s170 = scalar_lea.vmem %s3, %s169
      %v171 = vld [vmem:[%s2] sm:$0x1]
      %v172 = vld [vmem:[%s165] sm:$0xf]
      %v173 = vld [vmem:[%s165 + $0x4] sm:$0xf]
      %v174 = vld [vmem:[%s1] sm:$0xf]
      %v175 = vld [vmem:[%s1 + $0x4] sm:$0xf]
      %v176 = vld [vmem:[%s1 + $0x8] sm:$0xf]
      %v177 = vld [vmem:[%s1 + $0xc] sm:$0xf]
      %v178 = vld [vmem:[%s1 + $0x10] sm:$0xf]
      %v179 = vld [vmem:[%s1 + $0x14] sm:$0xf]
      %v180 = vld [vmem:[%s1 + $0x18] sm:$0xf]
      %v181 = vld [vmem:[%s1 + $0x1c] sm:$0xf]
      %v182 = vld [vmem:[%s1 + $0x20] sm:$0xf]
      %v183 = vld [vmem:[%s1 + $0x24] sm:$0xf]
      %v184 = vld [vmem:[%s1 + $0x28] sm:$0xf]
      %v185 = vld [vmem:[%s1 + $0x2c] sm:$0xf]
      %v186 = vld [vmem:[%s1 + $0x30] sm:$0xf]
      %v187 = vld [vmem:[%s1 + $0x34] sm:$0xf]
      %v188 = vld [vmem:[%s1 + $0x38] sm:$0xf]
      %v189 = vld [vmem:[%s1 + $0x3c] sm:$0xf]
      %v192 = vunpack.c.l.b16 %v172
      %v193 = vunpack.c.l.b16 %v173
      %v194 = vpack.c.b16 %v193, %v192
      %v212 = vunpack.c.l.b16 %v174
      %v213 = vunpack.c.l.b16 %v175
      %v214 = vunpack.c.l.b16 %v176
      %v215 = vunpack.c.l.b16 %v177
      %v216 = vunpack.c.l.b16 %v178
      %v217 = vunpack.c.l.b16 %v179
      %v218 = vunpack.c.l.b16 %v180
      %v219 = vunpack.c.l.b16 %v181
      %v220 = vunpack.c.l.b16 %v182
      %v221 = vunpack.c.l.b16 %v183
      %v222 = vunpack.c.l.b16 %v184
      %v223 = vunpack.c.l.b16 %v185
      %v224 = vunpack.c.l.b16 %v186
      %v225 = vunpack.c.l.b16 %v187
      %v226 = vunpack.c.l.b16 %v188
      %v227 = vunpack.c.l.b16 %v189
      %v228 = vpack.c.b16 %v213, %v212
      %v229 = vpack.c.b16 %v215, %v214
      %v230 = vpack.c.b16 %v217, %v216
      %v231 = vpack.c.b16 %v219, %v218
      %v232 = vpack.c.b16 %v221, %v220
      %v233 = vpack.c.b16 %v223, %v222
      %v234 = vpack.c.b16 %v225, %v224
      %v235 = vpack.c.b16 %v227, %v226
      %244 = vmatpush.bf16.msra.mxu0 %v235
      %245 = vmatpush.bf16.msra.mxu0 %v234
      %246 = vmatpush.bf16.msra.mxu0 %v233
      %247 = vmatpush.bf16.msra.mxu0 %v232
      %248 = vmatpush.bf16.msra.mxu0 %v231
      %249 = vmatpush.bf16.msra.mxu0 %v230
      %250 = vmatpush.bf16.msra.mxu0 %v229
      %251 = vmatpush.bf16.msra.mxu0 %v228
      %252 = vmatmul.bf16.gmra.mxu0 %v194
      %v253 = vpop.f32.mrf.mxu0
      %v254 = vadd.f32 0.0, %v253
      %v255 = vpop.f32.mrf.mxu0
      %v256 = vadd.f32 0.0, %v255
      %257 = vdwg.mxu0
      %v259 = vperm.slane %v171, 0
      %v261 = vadd.f32 %v259, %v254
      %v262 = vadd.f32 %v259, %v256
      %s263 = scalar_lea.vmem %s165, 8
      %v264 = vld [vmem:[%s263] sm:$0xf]
      %v265 = vld [vmem:[%s263 + $0x4] sm:$0xf]
      %s266 = scalar_lea.vmem %s1, 64
      %v267 = vld [vmem:[%s266] sm:$0xf]
      %v268 = vld [vmem:[%s266 + $0x4] sm:$0xf]
      %v269 = vld [vmem:[%s266 + $0x8] sm:$0xf]
      %v270 = vld [vmem:[%s266 + $0xc] sm:$0xf]
      %v271 = vld [vmem:[%s266 + $0x10] sm:$0xf]
      %v272 = vld [vmem:[%s266 + $0x14] sm:$0xf]
      %v273 = vld [vmem:[%s266 + $0x18] sm:$0xf]
      %v274 = vld [vmem:[%s266 + $0x1c] sm:$0xf]
      %v275 = vld [vmem:[%s266 + $0x20] sm:$0xf]
      %v276 = vld [vmem:[%s266 + $0x24] sm:$0xf]
      %v277 = vld [vmem:[%s266 + $0x28] sm:$0xf]
      %v278 = vld [vmem:[%s266 + $0x2c] sm:$0xf]
      %v279 = vld [vmem:[%s266 + $0x30] sm:$0xf]
      %v280 = vld [vmem:[%s266 + $0x34] sm:$0xf]
      %v281 = vld [vmem:[%s266 + $0x38] sm:$0xf]
      %v282 = vld [vmem:[%s266 + $0x3c] sm:$0xf]
      %v285 = vunpack.c.l.b16 %v264
      %v286 = vunpack.c.l.b16 %v265
      %v287 = vpack.c.b16 %v286, %v285
      %v305 = vunpack.c.l.b16 %v267
      %v306 = vunpack.c.l.b16 %v268
      %v307 = vunpack.c.l.b16 %v269
      %v308 = vunpack.c.l.b16 %v270
      %v309 = vunpack.c.l.b16 %v271
      %v310 = vunpack.c.l.b16 %v272
      %v311 = vunpack.c.l.b16 %v273
      %v312 = vunpack.c.l.b16 %v274
      %v313 = vunpack.c.l.b16 %v275
      %v314 = vunpack.c.l.b16 %v276
      %v315 = vunpack.c.l.b16 %v277
      %v316 = vunpack.c.l.b16 %v278
      %v317 = vunpack.c.l.b16 %v279
      %v318 = vunpack.c.l.b16 %v280
      %v319 = vunpack.c.l.b16 %v281
      %v320 = vunpack.c.l.b16 %v282
      %v321 = vpack.c.b16 %v306, %v305
      %v322 = vpack.c.b16 %v308, %v307
      %v323 = vpack.c.b16 %v310, %v309
      %v324 = vpack.c.b16 %v312, %v311
      %v325 = vpack.c.b16 %v314, %v313
      %v326 = vpack.c.b16 %v316, %v315
      %v327 = vpack.c.b16 %v318, %v317
      %v328 = vpack.c.b16 %v320, %v319
      %337 = vmatpush.bf16.msra.mxu0 %v328
      %338 = vmatpush.bf16.msra.mxu0 %v327
      %339 = vmatpush.bf16.msra.mxu0 %v326
      %340 = vmatpush.bf16.msra.mxu0 %v325
      %341 = vmatpush.bf16.msra.mxu0 %v324
      %342 = vmatpush.bf16.msra.mxu0 %v323
      %343 = vmatpush.bf16.msra.mxu0 %v322
      %344 = vmatpush.bf16.msra.mxu0 %v321
      %345 = vmatmul.bf16.gmra.mxu0 %v287
      %v346 = vpop.f32.mrf.mxu0
      %v347 = vadd.f32 0.0, %v346
      %v348 = vpop.f32.mrf.mxu0
      %v349 = vadd.f32 0.0, %v348
      %350 = vdwg.mxu0
      %v351 = vadd.f32 %v261, %v347
      %v352 = vadd.f32 %v262, %v349
      %s353 = scalar_lea.vmem %s165, 16
      %v354 = vld [vmem:[%s353] sm:$0xf]
      %v355 = vld [vmem:[%s353 + $0x4] sm:$0xf]
      %s356 = scalar_lea.vmem %s1, 128
      %v357 = vld [vmem:[%s356] sm:$0xf]
      %v358 = vld [vmem:[%s356 + $0x4] sm:$0xf]
      %v359 = vld [vmem:[%s356 + $0x8] sm:$0xf]
      %v360 = vld [vmem:[%s356 + $0xc] sm:$0xf]
      %v361 = vld [vmem:[%s356 + $0x10] sm:$0xf]
      %v362 = vld [vmem:[%s356 + $0x14] sm:$0xf]
      %v363 = vld [vmem:[%s356 + $0x18] sm:$0xf]
      %v364 = vld [vmem:[%s356 + $0x1c] sm:$0xf]
      %v365 = vld [vmem:[%s356 + $0x20] sm:$0xf]
      %v366 = vld [vmem:[%s356 + $0x24] sm:$0xf]
      %v367 = vld [vmem:[%s356 + $0x28] sm:$0xf]
      %v368 = vld [vmem:[%s356 + $0x2c] sm:$0xf]
      %v369 = vld [vmem:[%s356 + $0x30] sm:$0xf]
      %v370 = vld [vmem:[%s356 + $0x34] sm:$0xf]
      %v371 = vld [vmem:[%s356 + $0x38] sm:$0xf]
      %v372 = vld [vmem:[%s356 + $0x3c] sm:$0xf]
      %v375 = vunpack.c.l.b16 %v354
      %v376 = vunpack.c.l.b16 %v355
      %v377 = vpack.c.b16 %v376, %v375
      %v395 = vunpack.c.l.b16 %v357
      %v396 = vunpack.c.l.b16 %v358
      %v397 = vunpack.c.l.b16 %v359
      %v398 = vunpack.c.l.b16 %v360
      %v399 = vunpack.c.l.b16 %v361
      %v400 = vunpack.c.l.b16 %v362
      %v401 = vunpack.c.l.b16 %v363
      %v402 = vunpack.c.l.b16 %v364
      %v403 = vunpack.c.l.b16 %v365
      %v404 = vunpack.c.l.b16 %v366
      %v405 = vunpack.c.l.b16 %v367
      %v406 = vunpack.c.l.b16 %v368
      %v407 = vunpack.c.l.b16 %v369
      %v408 = vunpack.c.l.b16 %v370
      %v409 = vunpack.c.l.b16 %v371
      %v410 = vunpack.c.l.b16 %v372
      %v411 = vpack.c.b16 %v396, %v395
      %v412 = vpack.c.b16 %v398, %v397
      %v413 = vpack.c.b16 %v400, %v399
      %v414 = vpack.c.b16 %v402, %v401
      %v415 = vpack.c.b16 %v404, %v403
      %v416 = vpack.c.b16 %v406, %v405
      %v417 = vpack.c.b16 %v408, %v407
      %v418 = vpack.c.b16 %v410, %v409
      %427 = vmatpush.bf16.msra.mxu0 %v418
      %428 = vmatpush.bf16.msra.mxu0 %v417
      %429 = vmatpush.bf16.msra.mxu0 %v416
      %430 = vmatpush.bf16.msra.mxu0 %v415
      %431 = vmatpush.bf16.msra.mxu0 %v414
      %432 = vmatpush.bf16.msra.mxu0 %v413
      %433 = vmatpush.bf16.msra.mxu0 %v412
      %434 = vmatpush.bf16.msra.mxu0 %v411
      %435 = vmatmul.bf16.gmra.mxu0 %v377
      %v436 = vpop.f32.mrf.mxu0
      %v437 = vadd.f32 0.0, %v436
      %v438 = vpop.f32.mrf.mxu0
      %v439 = vadd.f32 0.0, %v438
      %440 = vdwg.mxu0
      %v441 = vadd.f32 %v351, %v437
      %v442 = vadd.f32 %v352, %v439
      %443 = vst [vmem:[%s170] sm:$0xff] %v441
      %444 = vst [vmem:[%s170 + $0x8] sm:$0xff] %v442
      %p445 = scmp.lt.s32.totalorder %s14, 1
      %s446 = scalar_select %p445, %s14, 1
      %s447 = smul.addr %s446, 2
      %s448 = smul.addr %s447, 8
      %s449 = scalar_lea.vmem %s3, %s448
      // Predicated region
      $region33: #{decoder_forward.3} parent=31 // pred_check
        %p450 = pneg %p100
      $region34: #{decoder_forward.3} parent=31 // pred_check_branch
        %452 = sbr.rel (%p450) target = $region36
      $region35: #{decoder_forward.3} parent=31 // pred_region
        _
      $region36: #{decoder_forward.3} parent=31 // pred_fallthru
        _
    $region32: #{decoder_forward.3} parent=5 // pred_fallthru
      _
    %p453 = scmp.le.s32.totalorder 2, %s9
    // Predicated region
    $region37: #{decoder_forward.3} parent=5 // pred_check
      %p454 = pneg %p453
    $region38: #{decoder_forward.3} parent=5 // pred_check_branch
      %456 = sbr.rel (%p454) target = $region40
    $region39: #{decoder_forward.3} parent=5 // pred_region
      %s457 = ssub.s32 %s9, 2
      // Predicated region
      $region41: #{decoder_forward.3} parent=39 // pred_check
        %p458 = pneg %p106
      $region42: #{decoder_forward.3} parent=39 // pred_check_branch
        %460 = sbr.rel (%p458) target = $region44
      $region43: #{decoder_forward.3} parent=39 // pred_region
        %p461 = scmp.lt.s32.totalorder %s15, 1
        %s462 = scalar_select %p461, %s15, 1
        %s463 = smul.addr %s462, 2
        %s464 = smul.addr %s463, 8
        %s465 = scalar_lea.vmem %s3, %s464
      $region44: #{decoder_forward.3} parent=39 // pred_fallthru
        _
    $region40: #{decoder_forward.3} parent=5 // pred_fallthru
      _
  $region6: #{decoder_forward.3} parent=0 // loop_footer
    %s13 = sadd.s32 1, %s9
  $region7: #{decoder_forward.3} parent=0 // loop_footer_branch
    %8 = sbr.rel target = $region3
  $region8: #{decoder_forward.3} parent=0 // loop_exit
    _

</llo_original>
